<compile_context>
chip_gen: v7x
topology: tpu7x:2x2x1
jax: 0.10.0
libtpu: 0.0.40
codegen_flags: <defaults>
</compile_context>

<pallas_src>
import functools

import numpy as np
import jax
import jax.numpy as jnp
from jax import lax
from jax.experimental import pallas as pl
from jax.experimental.pallas import tpu as pltpu


def _round_up(x, m):
    return (x + m - 1) // m * m


# ----------------------------------------------------------------------------
# Pallas kernel: the whole MLP for one batch tile.
# ----------------------------------------------------------------------------
def onn_mlp_kernel(x_ref, w1_ref, b1_ref, w2_ref, b2_ref, w3_ref, b3_ref,
                   out_ref):
    # Layer 1: [raw_embed | ffm] @ W1 (BN1 folded). bf16 MXU matmul, f32 acc.
    h = jnp.dot(x_ref[...], w1_ref[...], preferred_element_type=jnp.float32)
    h = jnp.maximum(h + b1_ref[...], 0.0)

    # Layer 2: bf16 weights + bf16 activations on the MXU, f32 accumulation.
    h = jnp.dot(h.astype(jnp.bfloat16), w2_ref[...],
                preferred_element_type=jnp.float32)
    h = jnp.maximum(h + b2_ref[...], 0.0)

    # Final Linear to a single logit, computed as (1, TB) with the batch on the
    # lane axis so the output store is an unmasked lane-dense vst.  The scalar
    # bias b3 is read from SMEM.
    logit = lax.dot_general(w3_ref[...], h.astype(jnp.bfloat16),
                            (((1,), (1,)), ((), ())),
                            preferred_element_type=jnp.float32) + b3_ref[0, 0]
    out_ref[...] = jax.nn.sigmoid(logit)


# ----------------------------------------------------------------------------
# Parameter construction (raw params mirror the PyTorch module; kernel params
# are BN-folded, lane-padded and bf16-cast for the TPU kernel).
# ----------------------------------------------------------------------------
def fold_params_for_kernel(raw, feature_fields, embed_dim, eps=1e-5):
    F = len(feature_fields)
    D = embed_dim
    P = F * (F - 1) // 2
    in_dim = F * D + P
    w1, b1 = raw["w1"], raw["b1"]
    w2, b2 = raw["w2"], raw["b2"]
    w3, b3 = raw["w3"], raw["b3"]
    h1, h2 = w1.shape[1], w2.shape[1]
    K1P = _round_up(in_dim, 128)
    H1P, H2P = _round_up(h1, 128), _round_up(h2, 128)

    # Eval-mode BatchNorm as per-feature affine, folded into the Linears.
    s1 = raw["bn1_gamma"] / jnp.sqrt(raw["bn1_var"] + eps)
    t1 = raw["bn1_beta"] - raw["bn1_mean"] * s1
    s2 = raw["bn2_gamma"] / jnp.sqrt(raw["bn2_var"] + eps)
    t2 = raw["bn2_beta"] - raw["bn2_mean"] * s2

    w1f = w1 * s1[None, :]
    b1f = b1 * s1 + t1
    w1_full = jnp.pad(w1f, ((0, K1P - in_dim), (0, H1P - h1))).astype(jnp.bfloat16)
    b1_full = jnp.pad(b1f, (0, H1P - h1))[None, :].astype(jnp.float32)

    w2_full = jnp.pad(w2 * s2[None, :],
                      ((0, H1P - h1), (0, H2P - h2))).astype(jnp.bfloat16)
    b2_full = jnp.pad(b2 * s2 + t2, (0, H2P - h2))[None, :].astype(jnp.float32)

    w3_row = jnp.pad(w3[:, 0], (0, H2P - h2))[None, :].astype(jnp.bfloat16)
    b3_s = b3.reshape(1, 1).astype(jnp.float32)

    return dict(w1=w1_full, b1=b1_full, w2=w2_full, b2=b2_full,
                w3=w3_row, b3=b3_s)


def init_params(key, feature_fields, embed_dim, mlp_dims):
    F = len(feature_fields)
    total = int(sum(feature_fields))
    P = F * (F - 1) // 2
    in_dim = embed_dim * F + P
    keys = jax.random.split(key, 4)

    # F field-aware embedding tables (xavier-uniform-style bound), stacked.
    bound = float(np.sqrt(6.0 / (total + embed_dim)))
    embed_tables = jax.random.uniform(
        keys[0], (F, total, embed_dim), minval=-bound, maxval=bound,
        dtype=jnp.float32)

    def linear(k, fan_in, fan_out):
        b = float(np.sqrt(1.0 / fan_in))
        kw, kb = jax.random.split(k)
        w = jax.random.uniform(kw, (fan_in, fan_out), minval=-b, maxval=b,
                               dtype=jnp.float32)
        bias = jax.random.uniform(kb, (fan_out,), minval=-b, maxval=b,
                                  dtype=jnp.float32)
        return w, bias

    h1, h2 = mlp_dims
    w1, b1 = linear(keys[1], in_dim, h1)
    w2, b2 = linear(keys[2], h1, h2)
    w3, b3 = linear(keys[3], h2, 1)

    raw = dict(
        embed_tables=embed_tables,
        w1=w1, b1=b1, w2=w2, b2=b2, w3=w3, b3=b3,
        bn1_gamma=jnp.ones((h1,), jnp.float32),
        bn1_beta=jnp.zeros((h1,), jnp.float32),
        bn1_mean=jnp.zeros((h1,), jnp.float32),
        bn1_var=jnp.ones((h1,), jnp.float32),
        bn2_gamma=jnp.ones((h2,), jnp.float32),
        bn2_beta=jnp.zeros((h2,), jnp.float32),
        bn2_mean=jnp.zeros((h2,), jnp.float32),
        bn2_var=jnp.ones((h2,), jnp.float32),
    )
    kernel = fold_params_for_kernel(raw, feature_fields, embed_dim)
    return dict(raw=raw, kernel=kernel)


# ----------------------------------------------------------------------------
# XLA glue: embedding gather (only the needed (table, field) slices) + f32 FFM
# reduction.  Data-dependent gathers stay outside the Pallas kernel.
# ----------------------------------------------------------------------------
def _build_features(x, embed_tables, feature_fields):
    F = len(feature_fields)
    B = x.shape[0]
    total, D = embed_tables.shape[1], embed_tables.shape[2]
    offsets = jnp.asarray((0, *np.cumsum(feature_fields)[:-1]), dtype=jnp.int32)
    tmp = x + offsets[None, :]                                  # (B, F)

    pairs = [(i, j) for i in range(F - 1) for j in range(i + 1, F)]
    P = len(pairs)
    # (table, field) combinations actually consumed:
    #   raw part : table F-1, every field f
    #   FFM part : (table j-1, field i) and (table i, field j) for each i<j
    tables = np.asarray([F - 1] * F + [j - 1 for (_, j) in pairs]
                        + [i for (i, _) in pairs], np.int32)
    fields = np.asarray(list(range(F)) + [i for (i, _) in pairs]
                        + [j for (_, j) in pairs], np.int32)

    flat_tables = embed_tables.reshape(F * total, D)
    flat_idx = jnp.asarray(tables * total, jnp.int32)[None, :] + tmp[:, fields]
    gathered = jnp.take(flat_tables, flat_idx, axis=0)          # (B, F+2P, D)

    raw_embed = gathered[:, :F, :].reshape(B, F * D)            # (B, F*D)
    ffm = jnp.sum(gathered[:, F:F + P, :] * gathered[:, F + P:, :], axis=-1)
    return raw_embed, ffm                                       # (B, F*D), (B, P)


# ----------------------------------------------------------------------------
# Tile / VMEM sizing (per-generation).
# ----------------------------------------------------------------------------
def _vmem_budget_bytes():
    # ~3/4 of physical VMEM, capped at 96 MiB:
    #   v5e/v6e (128 MiB) -> 96 MiB;  v7x (64 MiB) -> 48 MiB.
    try:
        cap = int(pltpu.get_tpu_info().vmem_capacity_bytes)
    except Exception:  # conservative fallback if the query is unavailable
        cap = 64 * 1024 * 1024
    return min(cap * 3 // 4, 96 * 1024 * 1024)


def _vmem_estimate(tile_b, k1p, h1p, h2p):
    # Default pipeline double-buffers every operand.
    weight_bytes = 2 * (k1p * h1p * 2 + h1p * h2p * 2 + h2p * 2
                        + (h1p + h2p) * 4 + 4)
    return weight_bytes + 2 * tile_b * k1p * 2 + 2 * tile_b * 4


def _pick_tile_b(batch, k1p, h1p, h2p, budget):
    b128 = _round_up(max(batch, 1), 128)
    tile_b = min(1024, b128)
    # v7x has 2 TensorCores and the batch axis is "parallel": ensure the grid
    # has at least 2 steps whenever the batch allows it.
    if b128 >= 256:
        tile_b = min(tile_b, _round_up(b128 // 2, 128))
    while tile_b > 128 and _vmem_estimate(tile_b, k1p, h1p, h2p) > budget:
        tile_b -= 128
    return tile_b


# ----------------------------------------------------------------------------
# Forward pass.
# ----------------------------------------------------------------------------
def onn_forward(x, params, feature_fields, *, tile_b=None):
    kp = params["kernel"]
    B = x.shape[0]

    raw_embed, ffm = _build_features(x, params["raw"]["embed_tables"],
                                     feature_fields)
    dnn_in = jnp.concatenate([raw_embed, ffm], axis=1)          # (B, F*D + P)

    K1P, H1P = kp["w1"].shape
    H2P = kp["w2"].shape[1]
    # Pad K to a multiple of 128 lanes (w1 rows are padded to match) and cast
    # the hot input stream to bf16 (halves its HBM traffic).
    dnn_in = jnp.pad(dnn_in, ((0, 0), (0, K1P - dnn_in.shape[1])))
    dnn_in = dnn_in.astype(jnp.bfloat16)

    budget = _vmem_budget_bytes()
    if tile_b is None:
        tile_b = _pick_tile_b(B, K1P, H1P, H2P, budget)
    vmem_limit = max(32 * 1024 * 1024,
                     min(budget,
                         _vmem_estimate(tile_b, K1P, H1P, H2P) + 4 * 1024 * 1024))

    Bp = _round_up(B, tile_b)
    if Bp != B:
        dnn_in = jnp.pad(dnn_in, ((0, Bp - B), (0, 0)))
    grid = (Bp // tile_b,)

    flops = 2 * Bp * (K1P * H1P + H1P * H2P + H2P)
    bytes_accessed = (Bp * K1P * 2 + Bp * 4
                      + 2 * (kp["w1"].size + kp["w2"].size + kp["w3"].size)
                      + 4 * (kp["b1"].size + kp["b2"].size + kp["b3"].size))

    out = pl.pallas_call(
        onn_mlp_kernel,
        out_shape=jax.ShapeDtypeStruct((1, Bp), jnp.float32),
        grid=grid,
        in_specs=[
            pl.BlockSpec((tile_b, K1P), lambda i: (i, 0)),   # batch-tiled input
            # Weights/biases: constant index_maps -> fetched once, VMEM-resident.
            pl.BlockSpec((K1P, H1P), lambda i: (0, 0)),
            pl.BlockSpec((1, H1P), lambda i: (0, 0)),
            pl.BlockSpec((H1P, H2P), lambda i: (0, 0)),
            pl.BlockSpec((1, H2P), lambda i: (0, 0)),
            pl.BlockSpec((1, H2P), lambda i: (0, 0)),
            pl.BlockSpec(memory_space=pltpu.MemorySpace.SMEM),  # scalar b3
        ],
        out_specs=pl.BlockSpec((1, tile_b), lambda i: (0, i)),  # lane-dense store
        compiler_params=pltpu.CompilerParams(
            dimension_semantics=("parallel",),
            vmem_limit_bytes=vmem_limit),
        cost_estimate=pl.CostEstimate(
            flops=flops, transcendentals=Bp, bytes_accessed=bytes_accessed),
    )(dnn_in, kp["w1"], kp["b1"], kp["w2"], kp["b2"], kp["w3"], kp["b3"])

    return out[0, :B]


# ----------------------------------------------------------------------------
# Pure-JAX f32 reference mirroring the PyTorch forward (eval mode).
# ----------------------------------------------------------------------------
def onn_reference(x, params, feature_fields, eps=1e-5):
    raw = params["raw"]
    raw_embed, ffm = _build_features(x, raw["embed_tables"], feature_fields)
    dnn_in = jnp.concatenate([raw_embed, ffm], axis=1)

    s1 = raw["bn1_gamma"] / jnp.sqrt(raw["bn1_var"] + eps)
    t1 = raw["bn1_beta"] - raw["bn1_mean"] * s1
    s2 = raw["bn2_gamma"] / jnp.sqrt(raw["bn2_var"] + eps)
    t2 = raw["bn2_beta"] - raw["bn2_mean"] * s2

    h = dnn_in @ raw["w1"] + raw["b1"]
    h = jnp.maximum(h * s1 + t1, 0.0)
    h = h @ raw["w2"] + raw["b2"]
    h = jnp.maximum(h * s2 + t2, 0.0)
    logit = h @ raw["w3"] + raw["b3"]
    return jax.nn.sigmoid(logit)[:, 0]


if __name__ == "__main__":
    feature_fields = (10, 20, 30, 40)   # 4 fields, vocab sum = 100
    embed_dim = 8
    mlp_dims = (32, 16)
    batch = 1000                        # -> tile_b 512, grid of 2 (v7x megacore-friendly)

    key = jax.random.PRNGKey(0)
    kp_key, kx = jax.random.split(key)
    params = init_params(kp_key, feature_fields, embed_dim, mlp_dims)

    F = len(feature_fields)
    x = jnp.stack(
        [jax.random.randint(jax.random.fold_in(kx, f), (batch,), 0,
                            feature_fields[f]) for f in range(F)],
        axis=1).astype(jnp.int32)                               # (B, F)

    fwd = jax.jit(functools.partial(onn_forward, feature_fields=feature_fields))
    out = jax.block_until_ready(fwd(x, params))
    ref = onn_reference(x, params, feature_fields)

    assert out.shape == (batch,)
    np.testing.assert_allclose(np.asarray(out), np.asarray(ref),
                               rtol=5e-3, atol=5e-3)
    print("KERNEL_OK")
</pallas_src>

<mosaic_0001>
module attributes {stable_mosaic.version = 11 : i64} {
  func.func @onn_mlp_kernel(%arg0: i32, %arg1: memref<512x128xbf16, #tpu.memory_space<vmem>>, %arg2: memref<128x128xbf16, #tpu.memory_space<vmem>>, %arg3: memref<1x128xf32, #tpu.memory_space<vmem>>, %arg4: memref<128x128xbf16, #tpu.memory_space<vmem>>, %arg5: memref<1x128xf32, #tpu.memory_space<vmem>>, %arg6: memref<1x128xbf16, #tpu.memory_space<vmem>>, %arg7: memref<1x1xf32, #tpu.memory_space<smem>>, %arg8: memref<1x512xf32, #tpu.memory_space<vmem>>) attributes {dimension_semantics = [#tpu.dimension_semantics<parallel>], iteration_bounds = array<i64: 2>, scalar_prefetch = 0 : i64, scratch_operands = 0 : i64, tpu.core_type = #tpu.core_type<tc>, window_params = [{transform_indices = @transform_0, window_bounds = array<i64: 512, 128>}, {pipeline_mode = #tpu.pipeline_mode<synchronous>, transform_indices = @transform_1, window_bounds = array<i64: 128, 128>}, {pipeline_mode = #tpu.pipeline_mode<synchronous>, transform_indices = @transform_2, window_bounds = array<i64: 1, 128>}, {pipeline_mode = #tpu.pipeline_mode<synchronous>, transform_indices = @transform_3, window_bounds = array<i64: 128, 128>}, {pipeline_mode = #tpu.pipeline_mode<synchronous>, transform_indices = @transform_4, window_bounds = array<i64: 1, 128>}, {pipeline_mode = #tpu.pipeline_mode<synchronous>, transform_indices = @transform_5, window_bounds = array<i64: 1, 128>}, {transform_indices = @transform_6, window_bounds = array<i64: 1, 1>}, {transform_indices = @transform_7, window_bounds = array<i64: 1, 512>}]} {
    %c0 = arith.constant 0 : index
    %c0_0 = arith.constant 0 : index
    %0 = vector.load %arg1[%c0, %c0_0] : memref<512x128xbf16, #tpu.memory_space<vmem>>, vector<512x128xbf16>
    %c0_1 = arith.constant 0 : index
    %c0_2 = arith.constant 0 : index
    %1 = vector.load %arg2[%c0_1, %c0_2] : memref<128x128xbf16, #tpu.memory_space<vmem>>, vector<128x128xbf16>
    %cst = arith.constant dense<0.000000e+00> : vector<512x128xf32>
    %2 = tpu.matmul %0, %1, %cst {dimension_numbers = #tpu.dot_dimension_numbers<[1], [0], [0], [1], [0, 0, 1, 1], [], []>} : vector<512x128xbf16>, vector<128x128xbf16>, vector<512x128xf32> -> vector<512x128xf32>
    %c0_3 = arith.constant 0 : index
    %c0_4 = arith.constant 0 : index
    %3 = vector.load %arg3[%c0_3, %c0_4] : memref<1x128xf32, #tpu.memory_space<vmem>>, vector<1x128xf32>
    %4 = vector.broadcast %3 : vector<1x128xf32> to vector<512x128xf32>
    %5 = arith.addf %2, %4 : vector<512x128xf32>
    %cst_5 = arith.constant 0.000000e+00 : f32
    %6 = vector.broadcast %cst_5 : f32 to vector<512x128xf32>
    %7 = arith.maximumf %5, %6 : vector<512x128xf32>
    %8 = arith.truncf %7 : vector<512x128xf32> to vector<512x128xbf16>
    %c0_6 = arith.constant 0 : index
    %c0_7 = arith.constant 0 : index
    %9 = vector.load %arg4[%c0_6, %c0_7] : memref<128x128xbf16, #tpu.memory_space<vmem>>, vector<128x128xbf16>
    %cst_8 = arith.constant dense<0.000000e+00> : vector<512x128xf32>
    %10 = tpu.matmul %8, %9, %cst_8 {dimension_numbers = #tpu.dot_dimension_numbers<[1], [0], [0], [1], [0, 0, 1, 1], [], []>} : vector<512x128xbf16>, vector<128x128xbf16>, vector<512x128xf32> -> vector<512x128xf32>
    %c0_9 = arith.constant 0 : index
    %c0_10 = arith.constant 0 : index
    %11 = vector.load %arg5[%c0_9, %c0_10] : memref<1x128xf32, #tpu.memory_space<vmem>>, vector<1x128xf32>
    %12 = vector.broadcast %11 : vector<1x128xf32> to vector<512x128xf32>
    %13 = arith.addf %10, %12 : vector<512x128xf32>
    %cst_11 = arith.constant 0.000000e+00 : f32
    %14 = vector.broadcast %cst_11 : f32 to vector<512x128xf32>
    %15 = arith.maximumf %13, %14 : vector<512x128xf32>
    %c0_12 = arith.constant 0 : index
    %c0_13 = arith.constant 0 : index
    %16 = vector.load %arg6[%c0_12, %c0_13] : memref<1x128xbf16, #tpu.memory_space<vmem>>, vector<1x128xbf16>
    %17 = arith.truncf %15 : vector<512x128xf32> to vector<512x128xbf16>
    %cst_14 = arith.constant dense<0.000000e+00> : vector<1x512xf32>
    %18 = tpu.matmul %16, %17, %cst_14 {dimension_numbers = #tpu.dot_dimension_numbers<[1], [1], [0], [0], [0, 0, 1, 0], [], []>} : vector<1x128xbf16>, vector<512x128xbf16>, vector<1x512xf32> -> vector<1x512xf32>
    %c0_15 = arith.constant 0 : index
    %c0_16 = arith.constant 0 : index
    %19 = memref.load %arg7[%c0_15, %c0_16] : memref<1x1xf32, #tpu.memory_space<smem>>
    %20 = vector.broadcast %19 : f32 to vector<1x512xf32>
    %21 = arith.addf %18, %20 : vector<1x512xf32>
    %22 = arith.negf %21 : vector<1x512xf32>
    %23 = math.exp %22 : vector<1x512xf32>
    %cst_17 = arith.constant 1.000000e+00 : f32
    %24 = vector.broadcast %cst_17 : f32 to vector<1x512xf32>
    %25 = arith.addf %24, %23 : vector<1x512xf32>
    %26 = arith.divf %24, %25 : vector<1x512xf32>
    %c0_18 = arith.constant 0 : index
    %c0_19 = arith.constant 0 : index
    %27 = vector.load %arg8[%c0_18, %c0_19] : memref<1x512xf32, #tpu.memory_space<vmem>>, vector<1x512xf32>
    tpu.vector_store %arg8[%c0_18, %c0_19], %26 {strides = array<i32>} : memref<1x512xf32, #tpu.memory_space<vmem>>, vector<1x512xf32>,
    return
  }
  func.func @transform_0(%arg0: i32) -> (i32, i32) {
    %c0_i32 = arith.constant 0 : i32
    %c0_i32_0 = arith.constant 0 : i32
    return %arg0, %c0_i32 : i32, i32
  }
  func.func @transform_1(%arg0: i32) -> (i32, i32) {
    %c0_i32 = arith.constant 0 : i32
    %c0_i32_0 = arith.constant 0 : i32
    %c0_i32_1 = arith.constant 0 : i32
    return %c0_i32, %c0_i32_0 : i32, i32
  }
  func.func @transform_2(%arg0: i32) -> (i32, i32) {
    %c0_i32 = arith.constant 0 : i32
    %c0_i32_0 = arith.constant 0 : i32
    %c0_i32_1 = arith.constant 0 : i32
    return %c0_i32, %c0_i32_0 : i32, i32
  }
  func.func @transform_3(%arg0: i32) -> (i32, i32) {
    %c0_i32 = arith.constant 0 : i32
    %c0_i32_0 = arith.constant 0 : i32
    %c0_i32_1 = arith.constant 0 : i32
    return %c0_i32, %c0_i32_0 : i32, i32
  }
  func.func @transform_4(%arg0: i32) -> (i32, i32) {
    %c0_i32 = arith.constant 0 : i32
    %c0_i32_0 = arith.constant 0 : i32
    %c0_i32_1 = arith.constant 0 : i32
    return %c0_i32, %c0_i32_0 : i32, i32
  }
  func.func @transform_5(%arg0: i32) -> (i32, i32) {
    %c0_i32 = arith.constant 0 : i32
    %c0_i32_0 = arith.constant 0 : i32
    %c0_i32_1 = arith.constant 0 : i32
    return %c0_i32, %c0_i32_0 : i32, i32
  }
  func.func @transform_6(%arg0: i32) -> (i32, i32) {
    %c0_i32 = arith.constant 0 : i32
    %c0_i32_0 = arith.constant 0 : i32
    %c0_i32_1 = arith.constant 0 : i32
    return %c0_i32, %c0_i32_0 : i32, i32
  }
  func.func @transform_7(%arg0: i32) -> (i32, i32) {
    %c0_i32 = arith.constant 0 : i32
    %c0_i32_0 = arith.constant 0 : i32
    return %c0_i32, %arg0 : i32, i32
  }
}

</mosaic_0001>

<llo_original>
// kernel: onn_forward.1
$region0: #{onn_forward.1}
  #allocation0 [shape = 'u32[]', space=smem, size = 0x4, offset = 0x4, fixed_abs, tag = 'smem constant byte address 0x4 - core index']
  #allocation1 [shape = 'u32[144,128]{1,0:T(1,128)}', space=vmem, size = 0x12000, scoped, tag = 'internal scratch']
  #allocation2 [shape = 'f32[1,1]{1,0:T(1,128)S(6)}', space=smem, size = 0x200, scoped, tag = 'scoped memory for onn_forward.1']
  %s0 = inlined_call_operand.vmem [shape: bf16[1024,128], index: 0, kind: input, shape index: {}]
  %s1 = inlined_call_operand.vmem [shape: bf16[128,128], index: 1, kind: input, shape index: {}]
  %s2 = inlined_call_operand.vmem [shape: f32[1,128], index: 2, kind: input, shape index: {}]
  %s3 = inlined_call_operand.vmem [shape: bf16[128,128], index: 3, kind: input, shape index: {}]
  %s4 = inlined_call_operand.vmem [shape: f32[1,128], index: 4, kind: input, shape index: {}]
  %s5 = inlined_call_operand.vmem [shape: bf16[1,128], index: 5, kind: input, shape index: {}]
  %s6 = inlined_call_operand.<no memory space> [shape: f32[1,1], index: 6, kind: input, shape index: {}]
  %s7 = inlined_call_operand.hbm [shape: f32[1,1024], index: 7, kind: output, shape index: {}]
  %s8 = sld [smem:[#allocation0]]
  $region61: #{onn_forward.1} parent=0
    _
  %s10 = ssub.s32 1, %s8
  %s11 = scalar_select 0, %s10, %s8
  %12 = sst [smem:[#allocation2]] %s6
  $region1: #{onn_forward.1} parent=0
    #allocation3 [shape = 'u8[4096]{0}', space=vmem, size = 0x1000, scoped, tag = 'output window, operand 0']
    #allocation4 [shape = 's32[2]{0}', space=sflag, size = 0x8, scoped, tag = 'scoped memory for onn_forward.1']
    %13 = vsyncpa [#allocation4], 0
    %s14 = scalar_lea.sflag [#allocation4], 1
    %15 = vsyncpa %s14, 0
    loop: start=0, step=1, limit=4
    $region2: #{onn_forward.1} parent=1 // loop_pre_header
      _
    $region3: #{onn_forward.1} parent=1 // loop_header
      %s17 = sphi 0, %s21
      %p18 = scmp.ge.s32.totalorder %s17, 4
      %s27 = sphi 0, %s29
      %s30 = sphi 0, %s27
      %s31 = sphi 0, %s30
      %s47 = sphi 0, %s31
      %s51 = sphi 0, %s51
      %s53 = sphi 0, %s51
      %s54 = sphi 0, %s53
      %s68 = sphi 0, %s54
      %s72 = sphi 0, %s72
      %s74 = sphi 0, %s72
      %s75 = sphi 0, %s74
      %s89 = sphi 0, %s75
      %s93 = sphi 0, %s93
      %s95 = sphi 0, %s93
      %s96 = sphi 0, %s95
      %s110 = sphi 0, %s96
      %s114 = sphi 0, %s114
      %s116 = sphi 0, %s114
      %s117 = sphi 0, %s116
      %s131 = sphi 0, %s117
      %s135 = sphi 0, %s135
      %s137 = sphi 0, %s135
      %s138 = sphi 0, %s137
      %s152 = sphi 0, %s138
      %s156 = sphi 0, %s156
      %s158 = sphi 0, %s156
      %s159 = sphi 0, %s158
      %s173 = sphi 0, %s159
      %s179 = sphi 0, %s181
      %s182 = sphi 0, %s179
      %s183 = sphi 0, %s182
      %s199 = sphi 0, %s183
    $region4: #{onn_forward.1} parent=1 // loop_header_branch
      %20 = sbr.rel (%p18) target = $region8
    $region5: #{onn_forward.1} parent=1 // loop_body
      %s22 = ssub.s32 %s17, 1
      %s23 = ssub.s32 %s17, 2
      %s24 = sadd.s32 %s17, 1
      %s25 = ssub.s32 %s17, %s24
      %p26 = scmp.eq.s32.totalorder %s25, 0
      %s28 = sadd.s32 %s27, 1
      %s29 = scalar_select %p26, %s27, %s28
      %p32 = pneg %p26
      %p33 = scmp.eq.s32.totalorder %s17, 1
      %p34 = por %p32, %p33
      %p35 = scmp.ne.s32.totalorder %s27, %s30
      %p36 = scmp.eq.s32.totalorder %s17, 0
      %p37 = por %p35, %p36
      %p38 = scmp.ne.s32.totalorder %s27, %s30
      %p39 = scmp.eq.s32.totalorder %s22, 1
      %p40 = por %p38, %p39
      %p41 = scmp.ne.s32.totalorder %s30, %s31
      %p42 = scmp.eq.s32.totalorder %s22, 0
      %p43 = por %p41, %p42
      %p44 = scmp.ne.s32.totalorder %s30, %s31
      %p45 = scmp.eq.s32.totalorder %s23, 1
      %p46 = por %p44, %p45
      %p48 = scmp.ne.s32.totalorder %s31, %s47
      %p49 = scmp.eq.s32.totalorder %s23, 0
      %p50 = por %p48, %p49
      %s52 = sadd.s32 %s51, 1
      %p55 = scmp.eq.s32.totalorder %s17, 1
      %p56 = scmp.ne.s32.totalorder %s51, %s53
      %p57 = scmp.eq.s32.totalorder %s17, 0
      %p58 = por %p56, %p57
      %p59 = scmp.ne.s32.totalorder %s51, %s53
      %p60 = scmp.eq.s32.totalorder %s22, 1
      %p61 = por %p59, %p60
      %p62 = scmp.ne.s32.totalorder %s53, %s54
      %p63 = scmp.eq.s32.totalorder %s22, 0
      %p64 = por %p62, %p63
      %p65 = scmp.ne.s32.totalorder %s53, %s54
      %p66 = scmp.eq.s32.totalorder %s23, 1
      %p67 = por %p65, %p66
      %p69 = scmp.ne.s32.totalorder %s54, %s68
      %p70 = scmp.eq.s32.totalorder %s23, 0
      %p71 = por %p69, %p70
      %s73 = sadd.s32 %s72, 1
      %p76 = scmp.eq.s32.totalorder %s17, 1
      %p77 = scmp.ne.s32.totalorder %s72, %s74
      %p78 = scmp.eq.s32.totalorder %s17, 0
      %p79 = por %p77, %p78
      %p80 = scmp.ne.s32.totalorder %s72, %s74
      %p81 = scmp.eq.s32.totalorder %s22, 1
      %p82 = por %p80, %p81
      %p83 = scmp.ne.s32.totalorder %s74, %s75
      %p84 = scmp.eq.s32.totalorder %s22, 0
      %p85 = por %p83, %p84
      %p86 = scmp.ne.s32.totalorder %s74, %s75
      %p87 = scmp.eq.s32.totalorder %s23, 1
      %p88 = por %p86, %p87
      %p90 = scmp.ne.s32.totalorder %s75, %s89
      %p91 = scmp.eq.s32.totalorder %s23, 0
      %p92 = por %p90, %p91
      %s94 = sadd.s32 %s93, 1
      %p97 = scmp.eq.s32.totalorder %s17, 1
      %p98 = scmp.ne.s32.totalorder %s93, %s95
      %p99 = scmp.eq.s32.totalorder %s17, 0
      %p100 = por %p98, %p99
      %p101 = scmp.ne.s32.totalorder %s93, %s95
      %p102 = scmp.eq.s32.totalorder %s22, 1
      %p103 = por %p101, %p102
      %p104 = scmp.ne.s32.totalorder %s95, %s96
      %p105 = scmp.eq.s32.totalorder %s22, 0
      %p106 = por %p104, %p105
      %p107 = scmp.ne.s32.totalorder %s95, %s96
      %p108 = scmp.eq.s32.totalorder %s23, 1
      %p109 = por %p107, %p108
      %p111 = scmp.ne.s32.totalorder %s96, %s110
      %p112 = scmp.eq.s32.totalorder %s23, 0
      %p113 = por %p111, %p112
      %s115 = sadd.s32 %s114, 1
      %p118 = scmp.eq.s32.totalorder %s17, 1
      %p119 = scmp.ne.s32.totalorder %s114, %s116
      %p120 = scmp.eq.s32.totalorder %s17, 0
      %p121 = por %p119, %p120
      %p122 = scmp.ne.s32.totalorder %s114, %s116
      %p123 = scmp.eq.s32.totalorder %s22, 1
      %p124 = por %p122, %p123
      %p125 = scmp.ne.s32.totalorder %s116, %s117
      %p126 = scmp.eq.s32.totalorder %s22, 0
      %p127 = por %p125, %p126
      %p128 = scmp.ne.s32.totalorder %s116, %s117
      %p129 = scmp.eq.s32.totalorder %s23, 1
      %p130 = por %p128, %p129
      %p132 = scmp.ne.s32.totalorder %s117, %s131
      %p133 = scmp.eq.s32.totalorder %s23, 0
      %p134 = por %p132, %p133
      %s136 = sadd.s32 %s135, 1
      %p139 = scmp.eq.s32.totalorder %s17, 1
      %p140 = scmp.ne.s32.totalorder %s135, %s137
      %p141 = scmp.eq.s32.totalorder %s17, 0
      %p142 = por %p140, %p141
      %p143 = scmp.ne.s32.totalorder %s135, %s137
      %p144 = scmp.eq.s32.totalorder %s22, 1
      %p145 = por %p143, %p144
      %p146 = scmp.ne.s32.totalorder %s137, %s138
      %p147 = scmp.eq.s32.totalorder %s22, 0
      %p148 = por %p146, %p147
      %p149 = scmp.ne.s32.totalorder %s137, %s138
      %p150 = scmp.eq.s32.totalorder %s23, 1
      %p151 = por %p149, %p150
      %p153 = scmp.ne.s32.totalorder %s138, %s152
      %p154 = scmp.eq.s32.totalorder %s23, 0
      %p155 = por %p153, %p154
      %s157 = sadd.s32 %s156, 1
      %p160 = scmp.eq.s32.totalorder %s17, 1
      %p161 = scmp.ne.s32.totalorder %s156, %s158
      %p162 = scmp.eq.s32.totalorder %s17, 0
      %p163 = por %p161, %p162
      %p164 = scmp.ne.s32.totalorder %s156, %s158
      %p165 = scmp.eq.s32.totalorder %s22, 1
      %p166 = por %p164, %p165
      %p167 = scmp.ne.s32.totalorder %s158, %s159
      %p168 = scmp.eq.s32.totalorder %s22, 0
      %p169 = por %p167, %p168
      %p170 = scmp.ne.s32.totalorder %s158, %s159
      %p171 = scmp.eq.s32.totalorder %s23, 1
      %p172 = por %p170, %p171
      %p174 = scmp.ne.s32.totalorder %s159, %s173
      %p175 = scmp.eq.s32.totalorder %s23, 0
      %p176 = por %p174, %p175
      %s177 = ssub.s32 %s17, %s24
      %p178 = scmp.eq.s32.totalorder %s177, 0
      %s180 = sadd.s32 %s179, 1
      %s181 = scalar_select %p178, %s179, %s180
      %p184 = pneg %p178
      %p185 = scmp.eq.s32.totalorder %s17, 1
      %p186 = por %p184, %p185
      %p187 = scmp.ne.s32.totalorder %s179, %s182
      %p188 = scmp.eq.s32.totalorder %s17, 0
      %p189 = por %p187, %p188
      %p190 = scmp.ne.s32.totalorder %s179, %s182
      %p191 = scmp.eq.s32.totalorder %s22, 1
      %p192 = por %p190, %p191
      %p193 = scmp.ne.s32.totalorder %s182, %s183
      %p194 = scmp.eq.s32.totalorder %s22, 0
      %p195 = por %p193, %p194
      %p196 = scmp.ne.s32.totalorder %s182, %s183
      %p197 = scmp.eq.s32.totalorder %s23, 1
      %p198 = por %p196, %p197
      %p200 = scmp.ne.s32.totalorder %s183, %s199
      %p201 = scmp.eq.s32.totalorder %s23, 0
      %p202 = por %p200, %p201
      %p203 = scmp.le.s32.totalorder 1, %s17
      %p204 = scmp.lt.s32.totalorder %s17, 3
      %p205 = pnand %p203, %p204
      %p206 = pneg %p205
      // Predicated region
      $region9: #{onn_forward.1} parent=5 // pred_check
        _
      $region10: #{onn_forward.1} parent=5 // pred_check_branch
        %208 = sbr.rel (%p205) target = $region12
      $region11: #{onn_forward.1} parent=5 // pred_region
        %s209 = ssub.s32 %s17, 1
        // Predicated region
        $region13: #{onn_forward.1} parent=11 // pred_check
          %p210 = pneg %p64
        $region14: #{onn_forward.1} parent=11 // pred_check_branch
          %212 = sbr.rel (%p210) target = $region16
        $region15: #{onn_forward.1} parent=11 // pred_region
          _
        $region16: #{onn_forward.1} parent=11 // pred_fallthru
          _
        // Predicated region
        $region17: #{onn_forward.1} parent=11 // pred_check
          %p213 = pneg %p85
        $region18: #{onn_forward.1} parent=11 // pred_check_branch
          %215 = sbr.rel (%p213) target = $region20
        $region19: #{onn_forward.1} parent=11 // pred_region
          _
        $region20: #{onn_forward.1} parent=11 // pred_fallthru
          _
        // Predicated region
        $region21: #{onn_forward.1} parent=11 // pred_check
          %p216 = pneg %p106
        $region22: #{onn_forward.1} parent=11 // pred_check_branch
          %218 = sbr.rel (%p216) target = $region24
        $region23: #{onn_forward.1} parent=11 // pred_region
          _
        $region24: #{onn_forward.1} parent=11 // pred_fallthru
          _
        // Predicated region
        $region25: #{onn_forward.1} parent=11 // pred_check
          %p219 = pneg %p127
        $region26: #{onn_forward.1} parent=11 // pred_check_branch
          %221 = sbr.rel (%p219) target = $region28
        $region27: #{onn_forward.1} parent=11 // pred_region
          _
        $region28: #{onn_forward.1} parent=11 // pred_fallthru
          _
        // Predicated region
        $region29: #{onn_forward.1} parent=11 // pred_check
          %p222 = pneg %p148
        $region30: #{onn_forward.1} parent=11 // pred_check_branch
          %224 = sbr.rel (%p222) target = $region32
        $region31: #{onn_forward.1} parent=11 // pred_region
          _
        $region32: #{onn_forward.1} parent=11 // pred_fallthru
          _
        // Predicated region
        $region33: #{onn_forward.1} parent=11 // pred_check
          %p225 = pneg %p169
        $region34: #{onn_forward.1} parent=11 // pred_check_branch
          %227 = sbr.rel (%p225) target = $region36
        $region35: #{onn_forward.1} parent=11 // pred_region
          _
        $region36: #{onn_forward.1} parent=11 // pred_fallthru
          _
      $region12: #{onn_forward.1} parent=5 // pred_fallthru
        _
      %p228 = scmp.lt.s32.totalorder %s17, 2
      // Predicated region
      $region37: #{onn_forward.1} parent=5 // pred_check
        %p229 = pneg %p228
      $region38: #{onn_forward.1} parent=5 // pred_check_branch
        %231 = sbr.rel (%p229) target = $region40
      $region39: #{onn_forward.1} parent=5 // pred_region
        // Predicated region
        $region41: #{onn_forward.1} parent=39 // pred_check
          %p232 = pneg %p37
        $region42: #{onn_forward.1} parent=39 // pred_check_branch
          %234 = sbr.rel (%p232) target = $region44
        $region43: #{onn_forward.1} parent=39 // pred_region
          %s235 = smul.u32 64, %s17
          %p236 = scmp.lt.s32.totalorder %s235, 127
          %s237 = scalar_select %p236, %s235, 127
          %s238 = smul.addr %s237, 4
          %s239 = scalar_lea.vmem %s0, %s238
          %s240 = smul.u32 64, %s17
        $region44: #{onn_forward.1} parent=39 // pred_fallthru
          _
      $region40: #{onn_forward.1} parent=5 // pred_fallthru
        _
      %p241 = scmp.le.s32.totalorder 1, %s17
      %p242 = scmp.lt.s32.totalorder %s17, 3
      %p243 = pnand %p241, %p242
      %p244 = pneg %p243
      // Predicated region
      $region45: #{onn_forward.1} parent=5 // pred_check
        _
      $region46: #{onn_forward.1} parent=5 // pred_check_branch
        %246 = sbr.rel (%p243) target = $region48
      $region47: #{onn_forward.1} parent=5 // pred_region
        %s247 = ssub.s32 %s17, 1
        %s248 = smul.u32 64, %s22
        %p249 = scmp.lt.s32.totalorder %s248, 127
        %s250 = scalar_select %p249, %s248, 127
        %s251 = smul.addr %s250, 4
        %s252 = scalar_lea.vmem %s0, %s251
        %p253 = pneg %p43
        %p254 = pneg %p40
        %p255 = pneg %p64
        %p256 = pneg %p61
        %p257 = pneg %p85
        %p258 = pneg %p82
        %p259 = pneg %p106
        %p260 = pneg %p103
        %p261 = pneg %p127
        %p262 = pneg %p124
        %p263 = pneg %p148
        %p264 = pneg %p145
        %p265 = pneg %p169
        %p266 = pneg %p166
        %p267 = pneg %p195
        %p268 = pneg %p192
        %s269 = sand.u32 %s182, 1
        %s270 = scalar_lea.sflag [#allocation4], %s269
        %s271 = sand.u32 %s182, 1
        %s272 = smul.addr %s271, 4
        %s273 = scalar_lea.vmem [#allocation3], %s272
        %s274 = smul.u32 64, %s22
        %p275 = scmp.lt.s32.totalorder %s274, 127
        %s276 = scalar_select %p275, %s274, 127
        %s277 = smul.addr %s276, 4
        %s278 = scalar_lea.vmem %s0, %s277
        %s279 = smul.u32 64, %s22
        %s280 = smul.u32 4, %s22
        %v282 = vld [vmem:[%s278] sm:$0xf]
        %v283 = vld [vmem:[%s278 + $0x4] sm:$0xf]
        %v284 = vld [vmem:[%s278 + $0x8] sm:$0xf]
        %v285 = vld [vmem:[%s278 + $0xc] sm:$0xf]
        %v286 = vld [vmem:[%s278 + $0x10] sm:$0xf]
        %v287 = vld [vmem:[%s278 + $0x14] sm:$0xf]
        %v288 = vld [vmem:[%s278 + $0x18] sm:$0xf]
        %v289 = vld [vmem:[%s278 + $0x1c] sm:$0xf]
        %v290 = vld [vmem:[%s278 + $0x20] sm:$0xf]
        %v291 = vld [vmem:[%s278 + $0x24] sm:$0xf]
        %v292 = vld [vmem:[%s278 + $0x28] sm:$0xf]
        %v293 = vld [vmem:[%s278 + $0x2c] sm:$0xf]
        %v294 = vld [vmem:[%s278 + $0x30] sm:$0xf]
        %v295 = vld [vmem:[%s278 + $0x34] sm:$0xf]
        %v296 = vld [vmem:[%s278 + $0x38] sm:$0xf]
        %v297 = vld [vmem:[%s278 + $0x3c] sm:$0xf]
        %v298 = vld [vmem:[%s278 + $0x40] sm:$0xf]
        %v299 = vld [vmem:[%s278 + $0x44] sm:$0xf]
        %v300 = vld [vmem:[%s278 + $0x48] sm:$0xf]
        %v301 = vld [vmem:[%s278 + $0x4c] sm:$0xf]
        %v302 = vld [vmem:[%s278 + $0x50] sm:$0xf]
        %v303 = vld [vmem:[%s278 + $0x54] sm:$0xf]
        %v304 = vld [vmem:[%s278 + $0x58] sm:$0xf]
        %v305 = vld [vmem:[%s278 + $0x5c] sm:$0xf]
        %v306 = vld [vmem:[%s278 + $0x60] sm:$0xf]
        %v307 = vld [vmem:[%s278 + $0x64] sm:$0xf]
        %v308 = vld [vmem:[%s278 + $0x68] sm:$0xf]
        %v309 = vld [vmem:[%s278 + $0x6c] sm:$0xf]
        %v310 = vld [vmem:[%s278 + $0x70] sm:$0xf]
        %v311 = vld [vmem:[%s278 + $0x74] sm:$0xf]
        %v312 = vld [vmem:[%s278 + $0x78] sm:$0xf]
        %v313 = vld [vmem:[%s278 + $0x7c] sm:$0xf]
        %v314 = vld [vmem:[%s278 + $0x80] sm:$0xf]
        %v315 = vld [vmem:[%s278 + $0x84] sm:$0xf]
        %v316 = vld [vmem:[%s278 + $0x88] sm:$0xf]
        %v317 = vld [vmem:[%s278 + $0x8c] sm:$0xf]
        %v318 = vld [vmem:[%s278 + $0x90] sm:$0xf]
        %v319 = vld [vmem:[%s278 + $0x94] sm:$0xf]
        %v320 = vld [vmem:[%s278 + $0x98] sm:$0xf]
        %v321 = vld [vmem:[%s278 + $0x9c] sm:$0xf]
        %v322 = vld [vmem:[%s278 + $0xa0] sm:$0xf]
        %v323 = vld [vmem:[%s278 + $0xa4] sm:$0xf]
        %v324 = vld [vmem:[%s278 + $0xa8] sm:$0xf]
        %v325 = vld [vmem:[%s278 + $0xac] sm:$0xf]
        %v326 = vld [vmem:[%s278 + $0xb0] sm:$0xf]
        %v327 = vld [vmem:[%s278 + $0xb4] sm:$0xf]
        %v328 = vld [vmem:[%s278 + $0xb8] sm:$0xf]
        %v329 = vld [vmem:[%s278 + $0xbc] sm:$0xf]
        %v330 = vld [vmem:[%s278 + $0xc0] sm:$0xf]
        %v331 = vld [vmem:[%s278 + $0xc4] sm:$0xf]
        %v332 = vld [vmem:[%s278 + $0xc8] sm:$0xf]
        %v333 = vld [vmem:[%s278 + $0xcc] sm:$0xf]
        %v334 = vld [vmem:[%s278 + $0xd0] sm:$0xf]
        %v335 = vld [vmem:[%s278 + $0xd4] sm:$0xf]
        %v336 = vld [vmem:[%s278 + $0xd8] sm:$0xf]
        %v337 = vld [vmem:[%s278 + $0xdc] sm:$0xf]
        %v338 = vld [vmem:[%s278 + $0xe0] sm:$0xf]
        %v339 = vld [vmem:[%s278 + $0xe4] sm:$0xf]
        %v340 = vld [vmem:[%s278 + $0xe8] sm:$0xf]
        %v341 = vld [vmem:[%s278 + $0xec] sm:$0xf]
        %v342 = vld [vmem:[%s278 + $0xf0] sm:$0xf]
        %v343 = vld [vmem:[%s278 + $0xf4] sm:$0xf]
        %v344 = vld [vmem:[%s278 + $0xf8] sm:$0xf]
        %v345 = vld [vmem:[%s278 + $0xfc] sm:$0xf]
        %v346 = vld [vmem:[%s1] sm:$0xf]
        %v347 = vld [vmem:[%s1 + $0x4] sm:$0xf]
        %v348 = vld [vmem:[%s1 + $0x8] sm:$0xf]
        %v349 = vld [vmem:[%s1 + $0xc] sm:$0xf]
        %v350 = vld [vmem:[%s1 + $0x10] sm:$0xf]
        %v351 = vld [vmem:[%s1 + $0x14] sm:$0xf]
        %v352 = vld [vmem:[%s1 + $0x18] sm:$0xf]
        %v353 = vld [vmem:[%s1 + $0x1c] sm:$0xf]
        %v354 = vld [vmem:[%s1 + $0x20] sm:$0xf]
        %v355 = vld [vmem:[%s1 + $0x24] sm:$0xf]
        %v356 = vld [vmem:[%s1 + $0x28] sm:$0xf]
        %v357 = vld [vmem:[%s1 + $0x2c] sm:$0xf]
        %v358 = vld [vmem:[%s1 + $0x30] sm:$0xf]
        %v359 = vld [vmem:[%s1 + $0x34] sm:$0xf]
        %v360 = vld [vmem:[%s1 + $0x38] sm:$0xf]
        %v361 = vld [vmem:[%s1 + $0x3c] sm:$0xf]
        %v362 = vld [vmem:[%s2] sm:$0x1]
        %v364 = vlaneseq
        %v365 = vshrl.u32 %v364, 7
        %v366 = vsub.s32 0, %v365
        %v367 = vrot.slane %v362, %v366
        %v433 = vunpack.c.l.b16 %v282
        %v434 = vunpack.c.l.b16 %v283
        %v435 = vunpack.c.l.b16 %v284
        %v436 = vunpack.c.l.b16 %v285
        %v437 = vunpack.c.l.b16 %v286
        %v438 = vunpack.c.l.b16 %v287
        %v439 = vunpack.c.l.b16 %v288
        %v440 = vunpack.c.l.b16 %v289
        %v441 = vunpack.c.l.b16 %v290
        %v442 = vunpack.c.l.b16 %v291
        %v443 = vunpack.c.l.b16 %v292
        %v444 = vunpack.c.l.b16 %v293
        %v445 = vunpack.c.l.b16 %v294
        %v446 = vunpack.c.l.b16 %v295
        %v447 = vunpack.c.l.b16 %v296
        %v448 = vunpack.c.l.b16 %v297
        %v449 = vunpack.c.l.b16 %v298
        %v450 = vunpack.c.l.b16 %v299
        %v451 = vunpack.c.l.b16 %v300
        %v452 = vunpack.c.l.b16 %v301
        %v453 = vunpack.c.l.b16 %v302
        %v454 = vunpack.c.l.b16 %v303
        %v455 = vunpack.c.l.b16 %v304
        %v456 = vunpack.c.l.b16 %v305
        %v457 = vunpack.c.l.b16 %v306
        %v458 = vunpack.c.l.b16 %v307
        %v459 = vunpack.c.l.b16 %v308
        %v460 = vunpack.c.l.b16 %v309
        %v461 = vunpack.c.l.b16 %v310
        %v462 = vunpack.c.l.b16 %v311
        %v463 = vunpack.c.l.b16 %v312
        %v464 = vunpack.c.l.b16 %v313
        %v465 = vunpack.c.l.b16 %v314
        %v466 = vunpack.c.l.b16 %v315
        %v467 = vunpack.c.l.b16 %v316
        %v468 = vunpack.c.l.b16 %v317
        %v469 = vunpack.c.l.b16 %v318
        %v470 = vunpack.c.l.b16 %v319
        %v471 = vunpack.c.l.b16 %v320
        %v472 = vunpack.c.l.b16 %v321
        %v473 = vunpack.c.l.b16 %v322
        %v474 = vunpack.c.l.b16 %v323
        %v475 = vunpack.c.l.b16 %v324
        %v476 = vunpack.c.l.b16 %v325
        %v477 = vunpack.c.l.b16 %v326
        %v478 = vunpack.c.l.b16 %v327
        %v479 = vunpack.c.l.b16 %v328
        %v480 = vunpack.c.l.b16 %v329
        %v481 = vunpack.c.l.b16 %v330
        %v482 = vunpack.c.l.b16 %v331
        %v483 = vunpack.c.l.b16 %v332
        %v484 = vunpack.c.l.b16 %v333
        %v485 = vunpack.c.l.b16 %v334
        %v486 = vunpack.c.l.b16 %v335
        %v487 = vunpack.c.l.b16 %v336
        %v488 = vunpack.c.l.b16 %v337
        %v489 = vunpack.c.l.b16 %v338
        %v490 = vunpack.c.l.b16 %v339
        %v491 = vunpack.c.l.b16 %v340
        %v492 = vunpack.c.l.b16 %v341
        %v493 = vunpack.c.l.b16 %v342
        %v494 = vunpack.c.l.b16 %v343
        %v495 = vunpack.c.l.b16 %v344
        %v496 = vunpack.c.l.b16 %v345
        %v497 = vpack.c.b16 %v434, %v433
        %v498 = vpack.c.b16 %v436, %v435
        %v499 = vpack.c.b16 %v438, %v437
        %v500 = vpack.c.b16 %v440, %v439
        %v501 = vpack.c.b16 %v442, %v441
        %v502 = vpack.c.b16 %v444, %v443
        %v503 = vpack.c.b16 %v446, %v445
        %v504 = vpack.c.b16 %v448, %v447
        %v505 = vpack.c.b16 %v450, %v449
        %v506 = vpack.c.b16 %v452, %v451
        %v507 = vpack.c.b16 %v454, %v453
        %v508 = vpack.c.b16 %v456, %v455
        %v509 = vpack.c.b16 %v458, %v457
        %v510 = vpack.c.b16 %v460, %v459
        %v511 = vpack.c.b16 %v462, %v461
        %v512 = vpack.c.b16 %v464, %v463
        %v513 = vpack.c.b16 %v466, %v465
        %v514 = vpack.c.b16 %v468, %v467
        %v515 = vpack.c.b16 %v470, %v469
        %v516 = vpack.c.b16 %v472, %v471
        %v517 = vpack.c.b16 %v474, %v473
        %v518 = vpack.c.b16 %v476, %v475
        %v519 = vpack.c.b16 %v478, %v477
        %v520 = vpack.c.b16 %v480, %v479
        %v521 = vpack.c.b16 %v482, %v481
        %v522 = vpack.c.b16 %v484, %v483
        %v523 = vpack.c.b16 %v486, %v485
        %v524 = vpack.c.b16 %v488, %v487
        %v525 = vpack.c.b16 %v490, %v489
        %v526 = vpack.c.b16 %v492, %v491
        %v527 = vpack.c.b16 %v494, %v493
        %v528 = vpack.c.b16 %v496, %v495
        %v577 = vunpack.c.l.b16 %v346
        %v578 = vunpack.c.l.b16 %v347
        %v579 = vunpack.c.l.b16 %v348
        %v580 = vunpack.c.l.b16 %v349
        %v581 = vunpack.c.l.b16 %v350
        %v582 = vunpack.c.l.b16 %v351
        %v583 = vunpack.c.l.b16 %v352
        %v584 = vunpack.c.l.b16 %v353
        %v585 = vunpack.c.l.b16 %v354
        %v586 = vunpack.c.l.b16 %v355
        %v587 = vunpack.c.l.b16 %v356
        %v588 = vunpack.c.l.b16 %v357
        %v589 = vunpack.c.l.b16 %v358
        %v590 = vunpack.c.l.b16 %v359
        %v591 = vunpack.c.l.b16 %v360
        %v592 = vunpack.c.l.b16 %v361
        %v593 = vpack.c.b16 %v578, %v577
        %v594 = vpack.c.b16 %v580, %v579
        %v595 = vpack.c.b16 %v582, %v581
        %v596 = vpack.c.b16 %v584, %v583
        %v597 = vpack.c.b16 %v586, %v585
        %v598 = vpack.c.b16 %v588, %v587
        %v599 = vpack.c.b16 %v590, %v589
        %v600 = vpack.c.b16 %v592, %v591
        %609 = vmatprep.subr.bf16.mxu0 0
        %610 = vmatpush1.bf16.msra.mxu0 %v593
        %611 = vmatprep.subr.bf16.mxu0 0
        %612 = vmatpush1.bf16.msra.mxu0 %v594
        %613 = vmatprep.subr.bf16.mxu0 0
        %614 = vmatpush1.bf16.msra.mxu0 %v595
        %615 = vmatprep.subr.bf16.mxu0 0
        %616 = vmatpush1.bf16.msra.mxu0 %v596
        %617 = vmatprep.subr.bf16.mxu0 0
        %618 = vmatpush1.bf16.msra.mxu0 %v597
        %619 = vmatprep.subr.bf16.mxu0 0
        %620 = vmatpush1.bf16.msra.mxu0 %v598
        %621 = vmatprep.subr.bf16.mxu0 0
        %622 = vmatpush1.bf16.msra.mxu0 %v599
        %623 = vmatprep.subr.bf16.mxu0 0
        %624 = vmatpush1.bf16.msra.mxu0 %v600
        %625 = vmatprep.subr.bf16.mxu0 0
        %626 = vmatpush1.bf16.msra.mxu0 0
        %627 = vmatprep.subr.bf16.mxu0 0
        %628 = vmatpush1.bf16.msra.mxu0 0
        %629 = vmatprep.subr.bf16.mxu0 0
        %630 = vmatpush1.bf16.msra.mxu0 0
        %631 = vmatprep.subr.bf16.mxu0 0
        %632 = vmatpush1.bf16.msra.mxu0 0
        %633 = vmatprep.subr.bf16.mxu0 0
        %634 = vmatpush1.bf16.msra.mxu0 0
        %635 = vmatprep.subr.bf16.mxu0 0
        %636 = vmatpush1.bf16.msra.mxu0 0
        %637 = vmatprep.subr.bf16.mxu0 0
        %638 = vmatpush1.bf16.msra.mxu0 0
        %639 = vmatprep.subr.bf16.mxu0 0
        %640 = vmatpush1.bf16.msra.mxu0 0
        %641 = vmatprep.mubr.bf16.mxu0 0
        %642 = vmatmul.mubr.bf16.gmra.mrb[0].mxu0 %v497
        %v643 = vpop.f32.mrb[0].mxu0
        %v644 = vadd.f32 %v367, %v643
        %v645 = vpop.f32.mrb[0].mxu0
        %v646 = vpop.f32.mrb[0].mxu0
        %v647 = vadd.f32 %v367, %v646
        %v648 = vpop.f32.mrb[0].mxu0
        %649 = vmatprep.mubr.bf16.mxu0 0
        %650 = vmatmul.mubr.bf16.gmra.mrb[0].mxu0 %v498
        %v651 = vpop.f32.mrb[0].mxu0
        %v652 = vadd.f32 %v367, %v651
        %v653 = vpop.f32.mrb[0].mxu0
        %v654 = vpop.f32.mrb[0].mxu0
        %v655 = vadd.f32 %v367, %v654
        %v656 = vpop.f32.mrb[0].mxu0
        %657 = vmatprep.mubr.bf16.mxu0 0
        %658 = vmatmul.mubr.bf16.gmra.mrb[0].mxu0 %v499
        %v659 = vpop.f32.mrb[0].mxu0
        %v660 = vadd.f32 %v367, %v659
        %v661 = vpop.f32.mrb[0].mxu0
        %v662 = vpop.f32.mrb[0].mxu0
        %v663 = vadd.f32 %v367, %v662
        %v664 = vpop.f32.mrb[0].mxu0
        %665 = vmatprep.mubr.bf16.mxu0 0
        %666 = vmatmul.mubr.bf16.gmra.mrb[0].mxu0 %v500
        %v667 = vpop.f32.mrb[0].mxu0
        %v668 = vadd.f32 %v367, %v667
        %v669 = vpop.f32.mrb[0].mxu0
        %v670 = vpop.f32.mrb[0].mxu0
        %v671 = vadd.f32 %v367, %v670
        %v672 = vpop.f32.mrb[0].mxu0
        %673 = vmatprep.mubr.bf16.mxu0 0
        %674 = vmatmul.mubr.bf16.gmra.mrb[0].mxu0 %v501
        %v675 = vpop.f32.mrb[0].mxu0
        %v676 = vadd.f32 %v367, %v675
        %v677 = vpop.f32.mrb[0].mxu0
        %v678 = vpop.f32.mrb[0].mxu0
        %v679 = vadd.f32 %v367, %v678
        %v680 = vpop.f32.mrb[0].mxu0
        %681 = vmatprep.mubr.bf16.mxu0 0
        %682 = vmatmul.mubr.bf16.gmra.mrb[0].mxu0 %v502
        %v683 = vpop.f32.mrb[0].mxu0
        %v684 = vadd.f32 %v367, %v683
        %v685 = vpop.f32.mrb[0].mxu0
        %v686 = vpop.f32.mrb[0].mxu0
        %v687 = vadd.f32 %v367, %v686
        %v688 = vpop.f32.mrb[0].mxu0
        %689 = vmatprep.mubr.bf16.mxu0 0
        %690 = vmatmul.mubr.bf16.gmra.mrb[0].mxu0 %v503
        %v691 = vpop.f32.mrb[0].mxu0
        %v692 = vadd.f32 %v367, %v691
        %v693 = vpop.f32.mrb[0].mxu0
        %v694 = vpop.f32.mrb[0].mxu0
        %v695 = vadd.f32 %v367, %v694
        %v696 = vpop.f32.mrb[0].mxu0
        %697 = vmatprep.mubr.bf16.mxu0 0
        %698 = vmatmul.mubr.bf16.gmra.mrb[0].mxu0 %v504
        %v699 = vpop.f32.mrb[0].mxu0
        %v700 = vadd.f32 %v367, %v699
        %v701 = vpop.f32.mrb[0].mxu0
        %v702 = vpop.f32.mrb[0].mxu0
        %v703 = vadd.f32 %v367, %v702
        %v704 = vpop.f32.mrb[0].mxu0
        %705 = vmatprep.mubr.bf16.mxu0 0
        %706 = vmatmul.mubr.bf16.gmra.mrb[0].mxu0 %v505
        %v707 = vpop.f32.mrb[0].mxu0
        %v708 = vadd.f32 %v367, %v707
        %v709 = vpop.f32.mrb[0].mxu0
        %v710 = vpop.f32.mrb[0].mxu0
        %v711 = vadd.f32 %v367, %v710
        %v712 = vpop.f32.mrb[0].mxu0
        %713 = vmatprep.mubr.bf16.mxu0 0
        %714 = vmatmul.mubr.bf16.gmra.mrb[0].mxu0 %v506
        %v715 = vpop.f32.mrb[0].mxu0
        %v716 = vadd.f32 %v367, %v715
        %v717 = vpop.f32.mrb[0].mxu0
        %v718 = vpop.f32.mrb[0].mxu0
        %v719 = vadd.f32 %v367, %v718
        %v720 = vpop.f32.mrb[0].mxu0
        %721 = vmatprep.mubr.bf16.mxu0 0
        %722 = vmatmul.mubr.bf16.gmra.mrb[0].mxu0 %v507
        %v723 = vpop.f32.mrb[0].mxu0
        %v724 = vadd.f32 %v367, %v723
        %v725 = vpop.f32.mrb[0].mxu0
        %v726 = vpop.f32.mrb[0].mxu0
        %v727 = vadd.f32 %v367, %v726
        %v728 = vpop.f32.mrb[0].mxu0
        %729 = vmatprep.mubr.bf16.mxu0 0
        %730 = vmatmul.mubr.bf16.gmra.mrb[0].mxu0 %v508
        %v731 = vpop.f32.mrb[0].mxu0
        %v732 = vadd.f32 %v367, %v731
        %v733 = vpop.f32.mrb[0].mxu0
        %v734 = vpop.f32.mrb[0].mxu0
        %v735 = vadd.f32 %v367, %v734
        %v736 = vpop.f32.mrb[0].mxu0
        %737 = vmatprep.mubr.bf16.mxu0 0
        %738 = vmatmul.mubr.bf16.gmra.mrb[0].mxu0 %v509
        %v739 = vpop.f32.mrb[0].mxu0
        %v740 = vadd.f32 %v367, %v739
        %v741 = vpop.f32.mrb[0].mxu0
        %v742 = vpop.f32.mrb[0].mxu0
        %v743 = vadd.f32 %v367, %v742
        %v744 = vpop.f32.mrb[0].mxu0
        %745 = vmatprep.mubr.bf16.mxu0 0
        %746 = vmatmul.mubr.bf16.gmra.mrb[0].mxu0 %v510
        %v747 = vpop.f32.mrb[0].mxu0
        %v748 = vadd.f32 %v367, %v747
        %v749 = vpop.f32.mrb[0].mxu0
        %v750 = vpop.f32.mrb[0].mxu0
        %v751 = vadd.f32 %v367, %v750
        %v752 = vpop.f32.mrb[0].mxu0
        %753 = vmatprep.mubr.bf16.mxu0 0
        %754 = vmatmul.mubr.bf16.gmra.mrb[0].mxu0 %v511
        %v755 = vpop.f32.mrb[0].mxu0
        %v756 = vadd.f32 %v367, %v755
        %v757 = vpop.f32.mrb[0].mxu0
        %v758 = vpop.f32.mrb[0].mxu0
        %v759 = vadd.f32 %v367, %v758
        %v760 = vpop.f32.mrb[0].mxu0
        %761 = vmatprep.mubr.bf16.mxu0 0
        %762 = vmatmul.mubr.bf16.gmra.mrb[0].mxu0 %v512
        %v763 = vpop.f32.mrb[0].mxu0
        %v764 = vadd.f32 %v367, %v763
        %v765 = vpop.f32.mrb[0].mxu0
        %v766 = vpop.f32.mrb[0].mxu0
        %v767 = vadd.f32 %v367, %v766
        %v768 = vpop.f32.mrb[0].mxu0
        %769 = vmatprep.mubr.bf16.mxu0 0
        %770 = vmatmul.mubr.bf16.gmra.mrb[0].mxu0 %v513
        %v771 = vpop.f32.mrb[0].mxu0
        %v772 = vadd.f32 %v367, %v771
        %v773 = vpop.f32.mrb[0].mxu0
        %v774 = vpop.f32.mrb[0].mxu0
        %v775 = vadd.f32 %v367, %v774
        %v776 = vpop.f32.mrb[0].mxu0
        %777 = vmatprep.mubr.bf16.mxu0 0
        %778 = vmatmul.mubr.bf16.gmra.mrb[0].mxu0 %v514
        %v779 = vpop.f32.mrb[0].mxu0
        %v780 = vadd.f32 %v367, %v779
        %v781 = vpop.f32.mrb[0].mxu0
        %v782 = vpop.f32.mrb[0].mxu0
        %v783 = vadd.f32 %v367, %v782
        %v784 = vpop.f32.mrb[0].mxu0
        %785 = vmatprep.mubr.bf16.mxu0 0
        %786 = vmatmul.mubr.bf16.gmra.mrb[0].mxu0 %v515
        %v787 = vpop.f32.mrb[0].mxu0
        %v788 = vadd.f32 %v367, %v787
        %v789 = vpop.f32.mrb[0].mxu0
        %v790 = vpop.f32.mrb[0].mxu0
        %v791 = vadd.f32 %v367, %v790
        %v792 = vpop.f32.mrb[0].mxu0
        %793 = vmatprep.mubr.bf16.mxu0 0
        %794 = vmatmul.mubr.bf16.gmra.mrb[0].mxu0 %v516
        %v795 = vpop.f32.mrb[0].mxu0
        %v796 = vadd.f32 %v367, %v795
        %v797 = vpop.f32.mrb[0].mxu0
        %v798 = vpop.f32.mrb[0].mxu0
        %v799 = vadd.f32 %v367, %v798
        %v800 = vpop.f32.mrb[0].mxu0
        %801 = vmatprep.mubr.bf16.mxu0 0
        %802 = vmatmul.mubr.bf16.gmra.mrb[0].mxu0 %v517
        %v803 = vpop.f32.mrb[0].mxu0
        %v804 = vadd.f32 %v367, %v803
        %v805 = vpop.f32.mrb[0].mxu0
        %v806 = vpop.f32.mrb[0].mxu0
        %v807 = vadd.f32 %v367, %v806
        %v808 = vpop.f32.mrb[0].mxu0
        %809 = vmatprep.mubr.bf16.mxu0 0
        %810 = vmatmul.mubr.bf16.gmra.mrb[0].mxu0 %v518
        %v811 = vpop.f32.mrb[0].mxu0
        %v812 = vadd.f32 %v367, %v811
        %v813 = vpop.f32.mrb[0].mxu0
        %v814 = vpop.f32.mrb[0].mxu0
        %v815 = vadd.f32 %v367, %v814
        %v816 = vpop.f32.mrb[0].mxu0
        %817 = vmatprep.mubr.bf16.mxu0 0
        %818 = vmatmul.mubr.bf16.gmra.mrb[0].mxu0 %v519
        %v819 = vpop.f32.mrb[0].mxu0
        %v820 = vadd.f32 %v367, %v819
        %v821 = vpop.f32.mrb[0].mxu0
        %v822 = vpop.f32.mrb[0].mxu0
        %v823 = vadd.f32 %v367, %v822
        %v824 = vpop.f32.mrb[0].mxu0
        %825 = vmatprep.mubr.bf16.mxu0 0
        %826 = vmatmul.mubr.bf16.gmra.mrb[0].mxu0 %v520
        %v827 = vpop.f32.mrb[0].mxu0
        %v828 = vadd.f32 %v367, %v827
        %v829 = vpop.f32.mrb[0].mxu0
        %v830 = vpop.f32.mrb[0].mxu0
        %v831 = vadd.f32 %v367, %v830
        %v832 = vpop.f32.mrb[0].mxu0
        %833 = vmatprep.mubr.bf16.mxu0 0
        %834 = vmatmul.mubr.bf16.gmra.mrb[0].mxu0 %v521
        %v835 = vpop.f32.mrb[0].mxu0
        %v836 = vadd.f32 %v367, %v835
        %v837 = vpop.f32.mrb[0].mxu0
        %v838 = vpop.f32.mrb[0].mxu0
        %v839 = vadd.f32 %v367, %v838
        %v840 = vpop.f32.mrb[0].mxu0
        %841 = vmatprep.mubr.bf16.mxu0 0
        %842 = vmatmul.mubr.bf16.gmra.mrb[0].mxu0 %v522
        %v843 = vpop.f32.mrb[0].mxu0
        %v844 = vadd.f32 %v367, %v843
        %v845 = vpop.f32.mrb[0].mxu0
        %v846 = vpop.f32.mrb[0].mxu0
        %v847 = vadd.f32 %v367, %v846
        %v848 = vpop.f32.mrb[0].mxu0
        %849 = vmatprep.mubr.bf16.mxu0 0
        %850 = vmatmul.mubr.bf16.gmra.mrb[0].mxu0 %v523
        %v851 = vpop.f32.mrb[0].mxu0
        %v852 = vadd.f32 %v367, %v851
        %v853 = vpop.f32.mrb[0].mxu0
        %v854 = vpop.f32.mrb[0].mxu0
        %v855 = vadd.f32 %v367, %v854
        %v856 = vpop.f32.mrb[0].mxu0
        %857 = vmatprep.mubr.bf16.mxu0 0
        %858 = vmatmul.mubr.bf16.gmra.mrb[0].mxu0 %v524
        %v859 = vpop.f32.mrb[0].mxu0
        %v860 = vadd.f32 %v367, %v859
        %v861 = vpop.f32.mrb[0].mxu0
        %v862 = vpop.f32.mrb[0].mxu0
        %v863 = vadd.f32 %v367, %v862
        %v864 = vpop.f32.mrb[0].mxu0
        %865 = vmatprep.mubr.bf16.mxu0 0
        %866 = vmatmul.mubr.bf16.gmra.mrb[0].mxu0 %v525
        %v867 = vpop.f32.mrb[0].mxu0
        %v868 = vadd.f32 %v367, %v867
        %v869 = vpop.f32.mrb[0].mxu0
        %v870 = vpop.f32.mrb[0].mxu0
        %v871 = vadd.f32 %v367, %v870
        %v872 = vpop.f32.mrb[0].mxu0
        %873 = vmatprep.mubr.bf16.mxu0 0
        %874 = vmatmul.mubr.bf16.gmra.mrb[0].mxu0 %v526
        %v875 = vpop.f32.mrb[0].mxu0
        %v876 = vadd.f32 %v367, %v875
        %v877 = vpop.f32.mrb[0].mxu0
        %v878 = vpop.f32.mrb[0].mxu0
        %v879 = vadd.f32 %v367, %v878
        %v880 = vpop.f32.mrb[0].mxu0
        %881 = vmatprep.mubr.bf16.mxu0 0
        %882 = vmatmul.mubr.bf16.gmra.mrb[0].mxu0 %v527
        %v883 = vpop.f32.mrb[0].mxu0
        %v884 = vadd.f32 %v367, %v883
        %v885 = vpop.f32.mrb[0].mxu0
        %v886 = vpop.f32.mrb[0].mxu0
        %v887 = vadd.f32 %v367, %v886
        %v888 = vpop.f32.mrb[0].mxu0
        %889 = vmatprep.mubr.bf16.mxu0 0
        %890 = vmatmul.mubr.bf16.gmra.mrb[0].mxu0 %v528
        %v891 = vpop.f32.mrb[0].mxu0
        %v892 = vadd.f32 %v367, %v891
        %v893 = vpop.f32.mrb[0].mxu0
        %v894 = vpop.f32.mrb[0].mxu0
        %v895 = vadd.f32 %v367, %v894
        %v896 = vpop.f32.mrb[0].mxu0
        %897 = vdwg.mxu0
        %v898 = vmax.f32 %v644, 0.0
        %v899 = vmax.f32 %v647, 0.0
        %v900 = vmax.f32 %v652, 0.0
        %v901 = vmax.f32 %v655, 0.0
        %v902 = vmax.f32 %v660, 0.0
        %v903 = vmax.f32 %v663, 0.0
        %v904 = vmax.f32 %v668, 0.0
        %v905 = vmax.f32 %v671, 0.0
        %v906 = vmax.f32 %v676, 0.0
        %v907 = vmax.f32 %v679, 0.0
        %v908 = vmax.f32 %v684, 0.0
        %v909 = vmax.f32 %v687, 0.0
        %v910 = vmax.f32 %v692, 0.0
        %v911 = vmax.f32 %v695, 0.0
        %v912 = vmax.f32 %v700, 0.0
        %v913 = vmax.f32 %v703, 0.0
        %v914 = vmax.f32 %v708, 0.0
        %v915 = vmax.f32 %v711, 0.0
        %v916 = vmax.f32 %v716, 0.0
        %v917 = vmax.f32 %v719, 0.0
        %v918 = vmax.f32 %v724, 0.0
        %v919 = vmax.f32 %v727, 0.0
        %v920 = vmax.f32 %v732, 0.0
        %v921 = vmax.f32 %v735, 0.0
        %v922 = vmax.f32 %v740, 0.0
        %v923 = vmax.f32 %v743, 0.0
        %v924 = vmax.f32 %v748, 0.0
        %v925 = vmax.f32 %v751, 0.0
        %v926 = vmax.f32 %v756, 0.0
        %v927 = vmax.f32 %v759, 0.0
        %v928 = vmax.f32 %v764, 0.0
        %v929 = vmax.f32 %v767, 0.0
        %v930 = vmax.f32 %v772, 0.0
        %v931 = vmax.f32 %v775, 0.0
        %v932 = vmax.f32 %v780, 0.0
        %v933 = vmax.f32 %v783, 0.0
        %v934 = vmax.f32 %v788, 0.0
        %v935 = vmax.f32 %v791, 0.0
        %v936 = vmax.f32 %v796, 0.0
        %v937 = vmax.f32 %v799, 0.0
        %v938 = vmax.f32 %v804, 0.0
        %v939 = vmax.f32 %v807, 0.0
        %v940 = vmax.f32 %v812, 0.0
        %v941 = vmax.f32 %v815, 0.0
        %v942 = vmax.f32 %v820, 0.0
        %v943 = vmax.f32 %v823, 0.0
        %v944 = vmax.f32 %v828, 0.0
        %v945 = vmax.f32 %v831, 0.0
        %v946 = vmax.f32 %v836, 0.0
        %v947 = vmax.f32 %v839, 0.0
        %v948 = vmax.f32 %v844, 0.0
        %v949 = vmax.f32 %v847, 0.0
        %v950 = vmax.f32 %v852, 0.0
        %v951 = vmax.f32 %v855, 0.0
        %v952 = vmax.f32 %v860, 0.0
        %v953 = vmax.f32 %v863, 0.0
        %v954 = vmax.f32 %v868, 0.0
        %v955 = vmax.f32 %v871, 0.0
        %v956 = vmax.f32 %v876, 0.0
        %v957 = vmax.f32 %v879, 0.0
        %v958 = vmax.f32 %v884, 0.0
        %v959 = vmax.f32 %v887, 0.0
        %v960 = vmax.f32 %v892, 0.0
        %v961 = vmax.f32 %v895, 0.0
        %v962 = vpack.c.bf16 %v899, %v898
        %v963 = vpack.c.bf16 %v901, %v900
        %v964 = vpack.c.bf16 %v903, %v902
        %v965 = vpack.c.bf16 %v905, %v904
        %v966 = vpack.c.bf16 %v907, %v906
        %v967 = vpack.c.bf16 %v909, %v908
        %v968 = vpack.c.bf16 %v911, %v910
        %v969 = vpack.c.bf16 %v913, %v912
        %v970 = vpack.c.bf16 %v915, %v914
        %v971 = vpack.c.bf16 %v917, %v916
        %v972 = vpack.c.bf16 %v919, %v918
        %v973 = vpack.c.bf16 %v921, %v920
        %v974 = vpack.c.bf16 %v923, %v922
        %v975 = vpack.c.bf16 %v925, %v924
        %v976 = vpack.c.bf16 %v927, %v926
        %v977 = vpack.c.bf16 %v929, %v928
        %v978 = vpack.c.bf16 %v931, %v930
        %v979 = vpack.c.bf16 %v933, %v932
        %v980 = vpack.c.bf16 %v935, %v934
        %v981 = vpack.c.bf16 %v937, %v936
        %v982 = vpack.c.bf16 %v939, %v938
        %v983 = vpack.c.bf16 %v941, %v940
        %v984 = vpack.c.bf16 %v943, %v942
        %v985 = vpack.c.bf16 %v945, %v944
        %v986 = vpack.c.bf16 %v947, %v946
        %v987 = vpack.c.bf16 %v949, %v948
        %v988 = vpack.c.bf16 %v951, %v950
        %v989 = vpack.c.bf16 %v953, %v952
        %v990 = vpack.c.bf16 %v955, %v954
        %v991 = vpack.c.bf16 %v957, %v956
        %v992 = vpack.c.bf16 %v959, %v958
        %v993 = vpack.c.bf16 %v961, %v960
        %v994 = vld [vmem:[%s3] sm:$0xf]
        %v995 = vld [vmem:[%s3 + $0x4] sm:$0xf]
        %v996 = vld [vmem:[%s3 + $0x8] sm:$0xf]
        %v997 = vld [vmem:[%s3 + $0xc] sm:$0xf]
        %v998 = vld [vmem:[%s3 + $0x10] sm:$0xf]
        %v999 = vld [vmem:[%s3 + $0x14] sm:$0xf]
        %v1000 = vld [vmem:[%s3 + $0x18] sm:$0xf]
        %v1001 = vld [vmem:[%s3 + $0x1c] sm:$0xf]
        %v1002 = vld [vmem:[%s3 + $0x20] sm:$0xf]
        %v1003 = vld [vmem:[%s3 + $0x24] sm:$0xf]
        %v1004 = vld [vmem:[%s3 + $0x28] sm:$0xf]
        %v1005 = vld [vmem:[%s3 + $0x2c] sm:$0xf]
        %v1006 = vld [vmem:[%s3 + $0x30] sm:$0xf]
        %v1007 = vld [vmem:[%s3 + $0x34] sm:$0xf]
        %v1008 = vld [vmem:[%s3 + $0x38] sm:$0xf]
        %v1009 = vld [vmem:[%s3 + $0x3c] sm:$0xf]
        %v1010 = vld [vmem:[%s4] sm:$0x1]
        %v1012 = vlaneseq
        %v1013 = vshrl.u32 %v1012, 7
        %v1014 = vsub.s32 0, %v1013
        %v1015 = vrot.slane %v1010, %v1014
        %v1033 = vunpack.c.l.b16 %v994
        %v1034 = vunpack.c.l.b16 %v995
        %v1035 = vunpack.c.l.b16 %v996
        %v1036 = vunpack.c.l.b16 %v997
        %v1037 = vunpack.c.l.b16 %v998
        %v1038 = vunpack.c.l.b16 %v999
        %v1039 = vunpack.c.l.b16 %v1000
        %v1040 = vunpack.c.l.b16 %v1001
        %v1041 = vunpack.c.l.b16 %v1002
        %v1042 = vunpack.c.l.b16 %v1003
        %v1043 = vunpack.c.l.b16 %v1004
        %v1044 = vunpack.c.l.b16 %v1005
        %v1045 = vunpack.c.l.b16 %v1006
        %v1046 = vunpack.c.l.b16 %v1007
        %v1047 = vunpack.c.l.b16 %v1008
        %v1048 = vunpack.c.l.b16 %v1009
        %v1049 = vpack.c.b16 %v1034, %v1033
        %v1050 = vpack.c.b16 %v1036, %v1035
        %v1051 = vpack.c.b16 %v1038, %v1037
        %v1052 = vpack.c.b16 %v1040, %v1039
        %v1053 = vpack.c.b16 %v1042, %v1041
        %v1054 = vpack.c.b16 %v1044, %v1043
        %v1055 = vpack.c.b16 %v1046, %v1045
        %v1056 = vpack.c.b16 %v1048, %v1047
        %1065 = vmatprep.subr.bf16.mxu0 0
        %1066 = vmatpush1.bf16.msra.mxu0 %v1049
        %1067 = vmatprep.subr.bf16.mxu0 0
        %1068 = vmatpush1.bf16.msra.mxu0 %v1050
        %1069 = vmatprep.subr.bf16.mxu0 0
        %1070 = vmatpush1.bf16.msra.mxu0 %v1051
        %1071 = vmatprep.subr.bf16.mxu0 0
        %1072 = vmatpush1.bf16.msra.mxu0 %v1052
        %1073 = vmatprep.subr.bf16.mxu0 0
        %1074 = vmatpush1.bf16.msra.mxu0 %v1053
        %1075 = vmatprep.subr.bf16.mxu0 0
        %1076 = vmatpush1.bf16.msra.mxu0 %v1054
        %1077 = vmatprep.subr.bf16.mxu0 0
        %1078 = vmatpush1.bf16.msra.mxu0 %v1055
        %1079 = vmatprep.subr.bf16.mxu0 0
        %1080 = vmatpush1.bf16.msra.mxu0 %v1056
        %1081 = vmatprep.subr.bf16.mxu0 0
        %1082 = vmatpush1.bf16.msra.mxu0 0
        %1083 = vmatprep.subr.bf16.mxu0 0
        %1084 = vmatpush1.bf16.msra.mxu0 0
        %1085 = vmatprep.subr.bf16.mxu0 0
        %1086 = vmatpush1.bf16.msra.mxu0 0
        %1087 = vmatprep.subr.bf16.mxu0 0
        %1088 = vmatpush1.bf16.msra.mxu0 0
        %1089 = vmatprep.subr.bf16.mxu0 0
        %1090 = vmatpush1.bf16.msra.mxu0 0
        %1091 = vmatprep.subr.bf16.mxu0 0
        %1092 = vmatpush1.bf16.msra.mxu0 0
        %1093 = vmatprep.subr.bf16.mxu0 0
        %1094 = vmatpush1.bf16.msra.mxu0 0
        %1095 = vmatprep.subr.bf16.mxu0 0
        %1096 = vmatpush1.bf16.msra.mxu0 0
        %1097 = vmatprep.mubr.bf16.mxu0 0
        %1098 = vmatmul.mubr.bf16.gmra.mrb[0].mxu0 %v962
        %v1099 = vpop.f32.mrb[0].mxu0
        %v1100 = vadd.f32 %v1015, %v1099
        %v1101 = vpop.f32.mrb[0].mxu0
        %v1102 = vpop.f32.mrb[0].mxu0
        %v1103 = vadd.f32 %v1015, %v1102
        %v1104 = vpop.f32.mrb[0].mxu0
        %1105 = vmatprep.mubr.bf16.mxu0 0
        %1106 = vmatmul.mubr.bf16.gmra.mrb[0].mxu0 %v963
        %v1107 = vpop.f32.mrb[0].mxu0
        %v1108 = vadd.f32 %v1015, %v1107
        %v1109 = vpop.f32.mrb[0].mxu0
        %v1110 = vpop.f32.mrb[0].mxu0
        %v1111 = vadd.f32 %v1015, %v1110
        %v1112 = vpop.f32.mrb[0].mxu0
        %1113 = vmatprep.mubr.bf16.mxu0 0
        %1114 = vmatmul.mubr.bf16.gmra.mrb[0].mxu0 %v964
        %v1115 = vpop.f32.mrb[0].mxu0
        %v1116 = vadd.f32 %v1015, %v1115
        %v1117 = vpop.f32.mrb[0].mxu0
        %v1118 = vpop.f32.mrb[0].mxu0
        %v1119 = vadd.f32 %v1015, %v1118
        %v1120 = vpop.f32.mrb[0].mxu0
        %1121 = vmatprep.mubr.bf16.mxu0 0
        %1122 = vmatmul.mubr.bf16.gmra.mrb[0].mxu0 %v965
        %v1123 = vpop.f32.mrb[0].mxu0
        %v1124 = vadd.f32 %v1015, %v1123
        %v1125 = vpop.f32.mrb[0].mxu0
        %v1126 = vpop.f32.mrb[0].mxu0
        %v1127 = vadd.f32 %v1015, %v1126
        %v1128 = vpop.f32.mrb[0].mxu0
        %1129 = vmatprep.mubr.bf16.mxu0 0
        %1130 = vmatmul.mubr.bf16.gmra.mrb[0].mxu0 %v966
        %v1131 = vpop.f32.mrb[0].mxu0
        %v1132 = vadd.f32 %v1015, %v1131
        %v1133 = vpop.f32.mrb[0].mxu0
        %v1134 = vpop.f32.mrb[0].mxu0
        %v1135 = vadd.f32 %v1015, %v1134
        %v1136 = vpop.f32.mrb[0].mxu0
        %1137 = vmatprep.mubr.bf16.mxu0 0
        %1138 = vmatmul.mubr.bf16.gmra.mrb[0].mxu0 %v967
        %v1139 = vpop.f32.mrb[0].mxu0
        %v1140 = vadd.f32 %v1015, %v1139
        %v1141 = vpop.f32.mrb[0].mxu0
        %v1142 = vpop.f32.mrb[0].mxu0
        %v1143 = vadd.f32 %v1015, %v1142
        %v1144 = vpop.f32.mrb[0].mxu0
        %1145 = vmatprep.mubr.bf16.mxu0 0
        %1146 = vmatmul.mubr.bf16.gmra.mrb[0].mxu0 %v968
        %v1147 = vpop.f32.mrb[0].mxu0
        %v1148 = vadd.f32 %v1015, %v1147
        %v1149 = vpop.f32.mrb[0].mxu0
        %v1150 = vpop.f32.mrb[0].mxu0
        %v1151 = vadd.f32 %v1015, %v1150
        %v1152 = vpop.f32.mrb[0].mxu0
        %1153 = vmatprep.mubr.bf16.mxu0 0
        %1154 = vmatmul.mubr.bf16.gmra.mrb[0].mxu0 %v969
        %v1155 = vpop.f32.mrb[0].mxu0
        %v1156 = vadd.f32 %v1015, %v1155
        %v1157 = vpop.f32.mrb[0].mxu0
        %v1158 = vpop.f32.mrb[0].mxu0
        %v1159 = vadd.f32 %v1015, %v1158
        %v1160 = vpop.f32.mrb[0].mxu0
        %1161 = vmatprep.mubr.bf16.mxu0 0
        %1162 = vmatmul.mubr.bf16.gmra.mrb[0].mxu0 %v970
        %v1163 = vpop.f32.mrb[0].mxu0
        %v1164 = vadd.f32 %v1015, %v1163
        %v1165 = vpop.f32.mrb[0].mxu0
        %v1166 = vpop.f32.mrb[0].mxu0
        %v1167 = vadd.f32 %v1015, %v1166
        %v1168 = vpop.f32.mrb[0].mxu0
        %1169 = vmatprep.mubr.bf16.mxu0 0
        %1170 = vmatmul.mubr.bf16.gmra.mrb[0].mxu0 %v971
        %v1171 = vpop.f32.mrb[0].mxu0
        %v1172 = vadd.f32 %v1015, %v1171
        %v1173 = vpop.f32.mrb[0].mxu0
        %v1174 = vpop.f32.mrb[0].mxu0
        %v1175 = vadd.f32 %v1015, %v1174
        %v1176 = vpop.f32.mrb[0].mxu0
        %1177 = vmatprep.mubr.bf16.mxu0 0
        %1178 = vmatmul.mubr.bf16.gmra.mrb[0].mxu0 %v972
        %v1179 = vpop.f32.mrb[0].mxu0
        %v1180 = vadd.f32 %v1015, %v1179
        %v1181 = vpop.f32.mrb[0].mxu0
        %v1182 = vpop.f32.mrb[0].mxu0
        %v1183 = vadd.f32 %v1015, %v1182
        %v1184 = vpop.f32.mrb[0].mxu0
        %1185 = vmatprep.mubr.bf16.mxu0 0
        %1186 = vmatmul.mubr.bf16.gmra.mrb[0].mxu0 %v973
        %v1187 = vpop.f32.mrb[0].mxu0
        %v1188 = vadd.f32 %v1015, %v1187
        %v1189 = vpop.f32.mrb[0].mxu0
        %v1190 = vpop.f32.mrb[0].mxu0
        %v1191 = vadd.f32 %v1015, %v1190
        %v1192 = vpop.f32.mrb[0].mxu0
        %1193 = vmatprep.mubr.bf16.mxu0 0
        %1194 = vmatmul.mubr.bf16.gmra.mrb[0].mxu0 %v974
        %v1195 = vpop.f32.mrb[0].mxu0
        %v1196 = vadd.f32 %v1015, %v1195
        %v1197 = vpop.f32.mrb[0].mxu0
        %v1198 = vpop.f32.mrb[0].mxu0
        %v1199 = vadd.f32 %v1015, %v1198
        %v1200 = vpop.f32.mrb[0].mxu0
        %1201 = vmatprep.mubr.bf16.mxu0 0
        %1202 = vmatmul.mubr.bf16.gmra.mrb[0].mxu0 %v975
        %v1203 = vpop.f32.mrb[0].mxu0
        %v1204 = vadd.f32 %v1015, %v1203
        %v1205 = vpop.f32.mrb[0].mxu0
        %v1206 = vpop.f32.mrb[0].mxu0
        %v1207 = vadd.f32 %v1015, %v1206
        %v1208 = vpop.f32.mrb[0].mxu0
        %1209 = vmatprep.mubr.bf16.mxu0 0
        %1210 = vmatmul.mubr.bf16.gmra.mrb[0].mxu0 %v976
        %v1211 = vpop.f32.mrb[0].mxu0
        %v1212 = vadd.f32 %v1015, %v1211
        %v1213 = vpop.f32.mrb[0].mxu0
        %v1214 = vpop.f32.mrb[0].mxu0
        %v1215 = vadd.f32 %v1015, %v1214
        %v1216 = vpop.f32.mrb[0].mxu0
        %1217 = vmatprep.mubr.bf16.mxu0 0
        %1218 = vmatmul.mubr.bf16.gmra.mrb[0].mxu0 %v977
        %v1219 = vpop.f32.mrb[0].mxu0
        %v1220 = vadd.f32 %v1015, %v1219
        %v1221 = vpop.f32.mrb[0].mxu0
        %v1222 = vpop.f32.mrb[0].mxu0
        %v1223 = vadd.f32 %v1015, %v1222
        %v1224 = vpop.f32.mrb[0].mxu0
        %1225 = vmatprep.mubr.bf16.mxu0 0
        %1226 = vmatmul.mubr.bf16.gmra.mrb[0].mxu0 %v978
        %v1227 = vpop.f32.mrb[0].mxu0
        %v1228 = vadd.f32 %v1015, %v1227
        %v1229 = vpop.f32.mrb[0].mxu0
        %v1230 = vpop.f32.mrb[0].mxu0
        %v1231 = vadd.f32 %v1015, %v1230
        %v1232 = vpop.f32.mrb[0].mxu0
        %1233 = vmatprep.mubr.bf16.mxu0 0
        %1234 = vmatmul.mubr.bf16.gmra.mrb[0].mxu0 %v979
        %v1235 = vpop.f32.mrb[0].mxu0
        %v1236 = vadd.f32 %v1015, %v1235
        %v1237 = vpop.f32.mrb[0].mxu0
        %v1238 = vpop.f32.mrb[0].mxu0
        %v1239 = vadd.f32 %v1015, %v1238
        %v1240 = vpop.f32.mrb[0].mxu0
        %1241 = vmatprep.mubr.bf16.mxu0 0
        %1242 = vmatmul.mubr.bf16.gmra.mrb[0].mxu0 %v980
        %v1243 = vpop.f32.mrb[0].mxu0
        %v1244 = vadd.f32 %v1015, %v1243
        %v1245 = vpop.f32.mrb[0].mxu0
        %v1246 = vpop.f32.mrb[0].mxu0
        %v1247 = vadd.f32 %v1015, %v1246
        %v1248 = vpop.f32.mrb[0].mxu0
        %1249 = vmatprep.mubr.bf16.mxu0 0
        %1250 = vmatmul.mubr.bf16.gmra.mrb[0].mxu0 %v981
        %v1251 = vpop.f32.mrb[0].mxu0
        %v1252 = vadd.f32 %v1015, %v1251
        %v1253 = vpop.f32.mrb[0].mxu0
        %v1254 = vpop.f32.mrb[0].mxu0
        %v1255 = vadd.f32 %v1015, %v1254
        %v1256 = vpop.f32.mrb[0].mxu0
        %1257 = vmatprep.mubr.bf16.mxu0 0
        %1258 = vmatmul.mubr.bf16.gmra.mrb[0].mxu0 %v982
        %v1259 = vpop.f32.mrb[0].mxu0
        %v1260 = vadd.f32 %v1015, %v1259
        %v1261 = vpop.f32.mrb[0].mxu0
        %v1262 = vpop.f32.mrb[0].mxu0
        %v1263 = vadd.f32 %v1015, %v1262
        %v1264 = vpop.f32.mrb[0].mxu0
        %1265 = vmatprep.mubr.bf16.mxu0 0
        %1266 = vmatmul.mubr.bf16.gmra.mrb[0].mxu0 %v983
        %v1267 = vpop.f32.mrb[0].mxu0
        %v1268 = vadd.f32 %v1015, %v1267
        %v1269 = vpop.f32.mrb[0].mxu0
        %v1270 = vpop.f32.mrb[0].mxu0
        %v1271 = vadd.f32 %v1015, %v1270
        %v1272 = vpop.f32.mrb[0].mxu0
        %1273 = vmatprep.mubr.bf16.mxu0 0
        %1274 = vmatmul.mubr.bf16.gmra.mrb[0].mxu0 %v984
        %v1275 = vpop.f32.mrb[0].mxu0
        %v1276 = vadd.f32 %v1015, %v1275
        %v1277 = vpop.f32.mrb[0].mxu0
        %v1278 = vpop.f32.mrb[0].mxu0
        %v1279 = vadd.f32 %v1015, %v1278
        %v1280 = vpop.f32.mrb[0].mxu0
        %1281 = vmatprep.mubr.bf16.mxu0 0
        %1282 = vmatmul.mubr.bf16.gmra.mrb[0].mxu0 %v985
        %v1283 = vpop.f32.mrb[0].mxu0
        %v1284 = vadd.f32 %v1015, %v1283
        %v1285 = vpop.f32.mrb[0].mxu0
        %v1286 = vpop.f32.mrb[0].mxu0
        %v1287 = vadd.f32 %v1015, %v1286
        %v1288 = vpop.f32.mrb[0].mxu0
        %1289 = vmatprep.mubr.bf16.mxu0 0
        %1290 = vmatmul.mubr.bf16.gmra.mrb[0].mxu0 %v986
        %v1291 = vpop.f32.mrb[0].mxu0
        %v1292 = vadd.f32 %v1015, %v1291
        %v1293 = vpop.f32.mrb[0].mxu0
        %v1294 = vpop.f32.mrb[0].mxu0
        %v1295 = vadd.f32 %v1015, %v1294
        %v1296 = vpop.f32.mrb[0].mxu0
        %1297 = vmatprep.mubr.bf16.mxu0 0
        %1298 = vmatmul.mubr.bf16.gmra.mrb[0].mxu0 %v987
        %v1299 = vpop.f32.mrb[0].mxu0
        %v1300 = vadd.f32 %v1015, %v1299
        %v1301 = vpop.f32.mrb[0].mxu0
        %v1302 = vpop.f32.mrb[0].mxu0
        %v1303 = vadd.f32 %v1015, %v1302
        %v1304 = vpop.f32.mrb[0].mxu0
        %1305 = vmatprep.mubr.bf16.mxu0 0
        %1306 = vmatmul.mubr.bf16.gmra.mrb[0].mxu0 %v988
        %v1307 = vpop.f32.mrb[0].mxu0
        %v1308 = vadd.f32 %v1015, %v1307
        %v1309 = vpop.f32.mrb[0].mxu0
        %v1310 = vpop.f32.mrb[0].mxu0
        %v1311 = vadd.f32 %v1015, %v1310
        %v1312 = vpop.f32.mrb[0].mxu0
        %1313 = vmatprep.mubr.bf16.mxu0 0
        %1314 = vmatmul.mubr.bf16.gmra.mrb[0].mxu0 %v989
        %v1315 = vpop.f32.mrb[0].mxu0
        %v1316 = vadd.f32 %v1015, %v1315
        %v1317 = vpop.f32.mrb[0].mxu0
        %v1318 = vpop.f32.mrb[0].mxu0
        %v1319 = vadd.f32 %v1015, %v1318
        %v1320 = vpop.f32.mrb[0].mxu0
        %1321 = vmatprep.mubr.bf16.mxu0 0
        %1322 = vmatmul.mubr.bf16.gmra.mrb[0].mxu0 %v990
        %v1323 = vpop.f32.mrb[0].mxu0
        %v1324 = vadd.f32 %v1015, %v1323
        %v1325 = vpop.f32.mrb[0].mxu0
        %v1326 = vpop.f32.mrb[0].mxu0
        %v1327 = vadd.f32 %v1015, %v1326
        %v1328 = vpop.f32.mrb[0].mxu0
        %1329 = vmatprep.mubr.bf16.mxu0 0
        %1330 = vmatmul.mubr.bf16.gmra.mrb[0].mxu0 %v991
        %v1331 = vpop.f32.mrb[0].mxu0
        %v1332 = vadd.f32 %v1015, %v1331
        %v1333 = vpop.f32.mrb[0].mxu0
        %v1334 = vpop.f32.mrb[0].mxu0
        %v1335 = vadd.f32 %v1015, %v1334
        %v1336 = vpop.f32.mrb[0].mxu0
        %1337 = vmatprep.mubr.bf16.mxu0 0
        %1338 = vmatmul.mubr.bf16.gmra.mrb[0].mxu0 %v992
        %v1339 = vpop.f32.mrb[0].mxu0
        %v1340 = vadd.f32 %v1015, %v1339
        %v1341 = vpop.f32.mrb[0].mxu0
        %v1342 = vpop.f32.mrb[0].mxu0
        %v1343 = vadd.f32 %v1015, %v1342
        %v1344 = vpop.f32.mrb[0].mxu0
        %1345 = vmatprep.mubr.bf16.mxu0 0
        %1346 = vmatmul.mubr.bf16.gmra.mrb[0].mxu0 %v993
        %v1347 = vpop.f32.mrb[0].mxu0
        %v1348 = vadd.f32 %v1015, %v1347
        %v1349 = vpop.f32.mrb[0].mxu0
        %v1350 = vpop.f32.mrb[0].mxu0
        %v1351 = vadd.f32 %v1015, %v1350
        %v1352 = vpop.f32.mrb[0].mxu0
        %1353 = vdwg.mxu0
        %v1354 = vmax.f32 %v1100, 0.0
        %v1355 = vmax.f32 %v1103, 0.0
        %v1356 = vmax.f32 %v1108, 0.0
        %v1357 = vmax.f32 %v1111, 0.0
        %v1358 = vmax.f32 %v1116, 0.0
        %v1359 = vmax.f32 %v1119, 0.0
        %v1360 = vmax.f32 %v1124, 0.0
        %v1361 = vmax.f32 %v1127, 0.0
        %v1362 = vmax.f32 %v1132, 0.0
        %v1363 = vmax.f32 %v1135, 0.0
        %v1364 = vmax.f32 %v1140, 0.0
        %v1365 = vmax.f32 %v1143, 0.0
        %v1366 = vmax.f32 %v1148, 0.0
        %v1367 = vmax.f32 %v1151, 0.0
        %v1368 = vmax.f32 %v1156, 0.0
        %v1369 = vmax.f32 %v1159, 0.0
        %v1370 = vmax.f32 %v1164, 0.0
        %v1371 = vmax.f32 %v1167, 0.0
        %v1372 = vmax.f32 %v1172, 0.0
        %v1373 = vmax.f32 %v1175, 0.0
        %v1374 = vmax.f32 %v1180, 0.0
        %v1375 = vmax.f32 %v1183, 0.0
        %v1376 = vmax.f32 %v1188, 0.0
        %v1377 = vmax.f32 %v1191, 0.0
        %v1378 = vmax.f32 %v1196, 0.0
        %v1379 = vmax.f32 %v1199, 0.0
        %v1380 = vmax.f32 %v1204, 0.0
        %v1381 = vmax.f32 %v1207, 0.0
        %v1382 = vmax.f32 %v1212, 0.0
        %v1383 = vmax.f32 %v1215, 0.0
        %v1384 = vmax.f32 %v1220, 0.0
        %v1385 = vmax.f32 %v1223, 0.0
        %v1386 = vmax.f32 %v1228, 0.0
        %v1387 = vmax.f32 %v1231, 0.0
        %v1388 = vmax.f32 %v1236, 0.0
        %v1389 = vmax.f32 %v1239, 0.0
        %v1390 = vmax.f32 %v1244, 0.0
        %v1391 = vmax.f32 %v1247, 0.0
        %v1392 = vmax.f32 %v1252, 0.0
        %v1393 = vmax.f32 %v1255, 0.0
        %v1394 = vmax.f32 %v1260, 0.0
        %v1395 = vmax.f32 %v1263, 0.0
        %v1396 = vmax.f32 %v1268, 0.0
        %v1397 = vmax.f32 %v1271, 0.0
        %v1398 = vmax.f32 %v1276, 0.0
        %v1399 = vmax.f32 %v1279, 0.0
        %v1400 = vmax.f32 %v1284, 0.0
        %v1401 = vmax.f32 %v1287, 0.0
        %v1402 = vmax.f32 %v1292, 0.0
        %v1403 = vmax.f32 %v1295, 0.0
        %v1404 = vmax.f32 %v1300, 0.0
        %v1405 = vmax.f32 %v1303, 0.0
        %v1406 = vmax.f32 %v1308, 0.0
        %v1407 = vmax.f32 %v1311, 0.0
        %v1408 = vmax.f32 %v1316, 0.0
        %v1409 = vmax.f32 %v1319, 0.0
        %v1410 = vmax.f32 %v1324, 0.0
        %v1411 = vmax.f32 %v1327, 0.0
        %v1412 = vmax.f32 %v1332, 0.0
        %v1413 = vmax.f32 %v1335, 0.0
        %v1414 = vmax.f32 %v1340, 0.0
        %v1415 = vmax.f32 %v1343, 0.0
        %v1416 = vmax.f32 %v1348, 0.0
        %v1417 = vmax.f32 %v1351, 0.0
        %v1418 = vld [vmem:[%s5] sm:$0x1]
        %v1419 = vpack.c.bf16 %v1355, %v1354
        %v1420 = vpack.c.bf16 %v1357, %v1356
        %v1421 = vpack.c.bf16 %v1359, %v1358
        %v1422 = vpack.c.bf16 %v1361, %v1360
        %v1423 = vpack.c.bf16 %v1363, %v1362
        %v1424 = vpack.c.bf16 %v1365, %v1364
        %v1425 = vpack.c.bf16 %v1367, %v1366
        %v1426 = vpack.c.bf16 %v1369, %v1368
        %v1427 = vpack.c.bf16 %v1371, %v1370
        %v1428 = vpack.c.bf16 %v1373, %v1372
        %v1429 = vpack.c.bf16 %v1375, %v1374
        %v1430 = vpack.c.bf16 %v1377, %v1376
        %v1431 = vpack.c.bf16 %v1379, %v1378
        %v1432 = vpack.c.bf16 %v1381, %v1380
        %v1433 = vpack.c.bf16 %v1383, %v1382
        %v1434 = vpack.c.bf16 %v1385, %v1384
        %v1435 = vpack.c.bf16 %v1387, %v1386
        %v1436 = vpack.c.bf16 %v1389, %v1388
        %v1437 = vpack.c.bf16 %v1391, %v1390
        %v1438 = vpack.c.bf16 %v1393, %v1392
        %v1439 = vpack.c.bf16 %v1395, %v1394
        %v1440 = vpack.c.bf16 %v1397, %v1396
        %v1441 = vpack.c.bf16 %v1399, %v1398
        %v1442 = vpack.c.bf16 %v1401, %v1400
        %v1443 = vpack.c.bf16 %v1403, %v1402
        %v1444 = vpack.c.bf16 %v1405, %v1404
        %v1445 = vpack.c.bf16 %v1407, %v1406
        %v1446 = vpack.c.bf16 %v1409, %v1408
        %v1447 = vpack.c.bf16 %v1411, %v1410
        %v1448 = vpack.c.bf16 %v1413, %v1412
        %v1449 = vpack.c.bf16 %v1415, %v1414
        %v1450 = vpack.c.bf16 %v1417, %v1416
        %s1451 = sld [smem:[#allocation2]]
        %v1452 = vstv %s1451
        %1453 = vmatprep.subr.bf16.mxu0 0
        %1454 = vmatpush1.bf16.xpose.msra.mxu0 %v1419
        %1455 = vmatprep.subr.bf16.mxu0 0
        %1456 = vmatpush1.bf16.xpose.msra.mxu0 %v1420
        %1457 = vmatprep.subr.bf16.mxu0 0
        %1458 = vmatpush1.bf16.xpose.msra.mxu0 %v1421
        %1459 = vmatprep.subr.bf16.mxu0 0
        %1460 = vmatpush1.bf16.xpose.msra.mxu0 %v1422
        %1461 = vmatprep.subr.bf16.mxu0 0
        %1462 = vmatpush1.bf16.xpose.msra.mxu0 %v1423
        %1463 = vmatprep.subr.bf16.mxu0 0
        %1464 = vmatpush1.bf16.xpose.msra.mxu0 %v1424
        %1465 = vmatprep.subr.bf16.mxu0 0
        %1466 = vmatpush1.bf16.xpose.msra.mxu0 %v1425
        %1467 = vmatprep.subr.bf16.mxu0 0
        %1468 = vmatpush1.bf16.xpose.msra.mxu0 %v1426
        %1469 = vmatprep.subr.bf16.mxu0 0
        %1470 = vmatpush1.bf16.xpose.msra.mxu0 %v1427
        %1471 = vmatprep.subr.bf16.mxu0 0
        %1472 = vmatpush1.bf16.xpose.msra.mxu0 %v1428
        %1473 = vmatprep.subr.bf16.mxu0 0
        %1474 = vmatpush1.bf16.xpose.msra.mxu0 %v1429
        %1475 = vmatprep.subr.bf16.mxu0 0
        %1476 = vmatpush1.bf16.xpose.msra.mxu0 %v1430
        %1477 = vmatprep.subr.bf16.mxu0 0
        %1478 = vmatpush1.bf16.xpose.msra.mxu0 %v1431
        %1479 = vmatprep.subr.bf16.mxu0 0
        %1480 = vmatpush1.bf16.xpose.msra.mxu0 %v1432
        %1481 = vmatprep.subr.bf16.mxu0 0
        %1482 = vmatpush1.bf16.xpose.msra.mxu0 %v1433
        %1483 = vmatprep.subr.bf16.mxu0 0
        %1484 = vmatpush1.bf16.xpose.msra.mxu0 %v1434
        %1485 = vmatprep.mubr.bf16.mxu0 0
        %1486 = vmatmul.mubr.bf16.gmra.mrb[0].mxu0 %v1418
        %v1487 = vpop.f32.mrb[0].mxu0
        %v1488 = vadd.f32 %v1452, %v1487
        %v1489 = vpop.f32.mrb[0].mxu0
        %v1490 = vadd.f32 %v1452, %v1489
        %v1491 = vpop.f32.mrb[0].mxu0
        %v1492 = vpop.f32.mrb[0].mxu0
        %1493 = vdwg.mxu0
        %1494 = vmatprep.subr.bf16.mxu0 0
        %1495 = vmatpush1.bf16.xpose.msra.mxu0 %v1435
        %1496 = vmatprep.subr.bf16.mxu0 0
        %1497 = vmatpush1.bf16.xpose.msra.mxu0 %v1436
        %1498 = vmatprep.subr.bf16.mxu0 0
        %1499 = vmatpush1.bf16.xpose.msra.mxu0 %v1437
        %1500 = vmatprep.subr.bf16.mxu0 0
        %1501 = vmatpush1.bf16.xpose.msra.mxu0 %v1438
        %1502 = vmatprep.subr.bf16.mxu0 0
        %1503 = vmatpush1.bf16.xpose.msra.mxu0 %v1439
        %1504 = vmatprep.subr.bf16.mxu0 0
        %1505 = vmatpush1.bf16.xpose.msra.mxu0 %v1440
        %1506 = vmatprep.subr.bf16.mxu0 0
        %1507 = vmatpush1.bf16.xpose.msra.mxu0 %v1441
        %1508 = vmatprep.subr.bf16.mxu0 0
        %1509 = vmatpush1.bf16.xpose.msra.mxu0 %v1442
        %1510 = vmatprep.subr.bf16.mxu0 0
        %1511 = vmatpush1.bf16.xpose.msra.mxu0 %v1443
        %1512 = vmatprep.subr.bf16.mxu0 0
        %1513 = vmatpush1.bf16.xpose.msra.mxu0 %v1444
        %1514 = vmatprep.subr.bf16.mxu0 0
        %1515 = vmatpush1.bf16.xpose.msra.mxu0 %v1445
        %1516 = vmatprep.subr.bf16.mxu0 0
        %1517 = vmatpush1.bf16.xpose.msra.mxu0 %v1446
        %1518 = vmatprep.subr.bf16.mxu0 0
        %1519 = vmatpush1.bf16.xpose.msra.mxu0 %v1447
        %1520 = vmatprep.subr.bf16.mxu0 0
        %1521 = vmatpush1.bf16.xpose.msra.mxu0 %v1448
        %1522 = vmatprep.subr.bf16.mxu0 0
        %1523 = vmatpush1.bf16.xpose.msra.mxu0 %v1449
        %1524 = vmatprep.subr.bf16.mxu0 0
        %1525 = vmatpush1.bf16.xpose.msra.mxu0 %v1450
        %1526 = vmatprep.mubr.bf16.mxu0 0
        %1527 = vmatmul.mubr.bf16.gmra.mrb[0].mxu0 %v1418
        %v1528 = vpop.f32.mrb[0].mxu0
        %v1529 = vadd.f32 %v1452, %v1528
        %v1530 = vpop.f32.mrb[0].mxu0
        %v1531 = vadd.f32 %v1452, %v1530
        %v1532 = vpop.f32.mrb[0].mxu0
        %v1533 = vpop.f32.mrb[0].mxu0
        %1534 = vdwg.mxu0
        %v1535 = vxor.u32 %v1488, 2147483648
        %v1536 = vxor.u32 %v1490, 2147483648
        %v1537 = vxor.u32 %v1529, 2147483648
        %v1538 = vxor.u32 %v1531, 2147483648
        %v1539 = vmul.f32 %v1535, 1.442695
        %v1540 = vpow.pop %v1539
        %v1541 = vmul.f32 %v1536, 1.442695
        %v1542 = vpow.pop %v1541
        %v1543 = vmul.f32 %v1537, 1.442695
        %v1544 = vpow.pop %v1543
        %v1545 = vmul.f32 %v1538, 1.442695
        %v1546 = vpow.pop %v1545
        %v1547 = vadd.f32 %v1540, 1.0
        %v1548 = vadd.f32 %v1542, 1.0
        %v1549 = vadd.f32 %v1544, 1.0
        %v1550 = vadd.f32 %v1546, 1.0
        %v1551 = vrcp.pop %v1547
        %v1552 = vmul.f32 1.0, %v1551
        %v1553 = vrcp.pop %v1548
        %v1554 = vmul.f32 1.0, %v1553
        %v1555 = vrcp.pop %v1549
        %v1556 = vmul.f32 1.0, %v1555
        %v1557 = vrcp.pop %v1550
        %v1558 = vmul.f32 1.0, %v1557
        %v1563 = vcombine.low %v1552, %v1554
        %v1564 = vcombine.low %v1556, %v1558
        %v1566 = vunpack.c.l.s4 1966171168
        %v1567 = vunpack.c.0.s8 %v1566
        %v1568 = vlaneseq
        %v1569 = vshrl.u32 %v1568, 7
        %v1570 = vsub.s32 %v1567, %v1569
        %v1571 = vrot.slane %v1563, %v1570
        %v1573 = vunpack.c.l.s4 1966171168
        %v1574 = vunpack.c.0.s8 %v1573
        %v1575 = vlaneseq
        %v1576 = vshrl.u32 %v1575, 7
        %v1577 = vsub.s32 %v1574, %v1576
        %v1578 = vrot.slane %v1564, %v1577
        %v1579 = vcombine.low %v1571, %v1578
        %v1581 = vunpack.c.l.s4 1966171168
        %v1582 = vunpack.c.0.s8 %v1581
        %v1583 = vlaneseq
        %v1584 = vshrl.u32 %v1583, 7
        %v1585 = vsub.s32 %v1582, %v1584
        %v1586 = vrot.slane %v1579, %v1585
        %v1588 = vlaneseq
        %vm1589 = vcmp.ge.s32.totalorder %v1588, 0
        %vm1590 = vcmp.lt.s32.totalorder %v1588, 512
        %vm1591 = vmand %vm1589, %vm1590
        %1592 = vst.msk [vmem:[%s273] sm:$0xf] %vm1591, %v1586
        %s1593 = sand.u32 %s182, 1
        %s1594 = scalar_lea.sflag [#allocation4], %s1593
        %s1595 = sand.u32 %s182, 1
        %s1596 = smul.addr %s1595, 4
        %s1597 = scalar_lea.vmem [#allocation3], %s1596
        // Predicated region
        $region49: #{onn_forward.1} parent=47 // pred_check
          %p1598 = pneg %p192
        $region50: #{onn_forward.1} parent=47 // pred_check_branch
          %1600 = sbr.rel (%p1598) target = $region52
        $region51: #{onn_forward.1} parent=47 // pred_region
          %s1601 = smul.u32 4, %s22
          %s1603 = ssub.s32 64, 64
          %1604 = vsyncadd %s1594, %s1603
          %s1605 = smul.addr %s1601, 16
          %s1606 = scalar_lea.hbm %s7, %s1605
          %s1608 = sshll.u32 %s1597, 4
          %s1609 = int_to_ptr.vmem [resolvable:$true] %s1608
          %1611 = dma.vmem_to_hbm [thread:$0]  %s1609, 64, %s1606, %s1594
        $region52: #{onn_forward.1} parent=47 // pred_fallthru
          _
      $region48: #{onn_forward.1} parent=5 // pred_fallthru
        _
      %p1612 = scmp.le.s32.totalorder 2, %s17
      // Predicated region
      $region53: #{onn_forward.1} parent=5 // pred_check
        %p1613 = pneg %p1612
      $region54: #{onn_forward.1} parent=5 // pred_check_branch
        %1615 = sbr.rel (%p1613) target = $region56
      $region55: #{onn_forward.1} parent=5 // pred_region
        %s1616 = ssub.s32 %s17, 2
        // Predicated region
        $region57: #{onn_forward.1} parent=55 // pred_check
          %p1617 = pneg %p198
        $region58: #{onn_forward.1} parent=55 // pred_check_branch
          %1619 = sbr.rel (%p1617) target = $region60
        $region59: #{onn_forward.1} parent=55 // pred_region
          %s1620 = sand.u32 %s183, 1
          %s1621 = scalar_lea.sflag [#allocation4], %s1620
          %s1622 = sand.u32 %s183, 1
          %s1623 = smul.addr %s1622, 4
          %s1624 = scalar_lea.vmem [#allocation3], %s1623
          %1625 = dma.done %s1621, 64
        $region60: #{onn_forward.1} parent=55 // pred_fallthru
          _
      $region56: #{onn_forward.1} parent=5 // pred_fallthru
        _
    $region6: #{onn_forward.1} parent=1 // loop_footer
      %s21 = sadd.s32 1, %s17
    $region7: #{onn_forward.1} parent=1 // loop_footer_branch
      %16 = sbr.rel target = $region3
    $region8: #{onn_forward.1} parent=1 // loop_exit
      _
    %1626 = vsyncpa [#allocation4], 1
    %s1627 = scalar_lea.sflag [#allocation4], 1
    %1628 = vsyncpa %s1627, 1

</llo_original>
